<compile_context>
chip_gen: v6e
topology: v6e:2x2x1
jax: 0.10.0
libtpu: 0.0.40
codegen_flags: <defaults>
</compile_context>

<pallas_src>
import functools
import math

import jax
import jax.numpy as jnp
from jax.experimental import pallas as pl
from jax.experimental.pallas import tpu as pltpu

LEAKY_SLOPE = 0.2
BN_EPS = 1e-5


# ---------------------------------------------------------------------------
# Pallas kernels.  All GEMMs are transposed:  out[c, m] = sum_k w[c, k]*cols[k, m]
#   w_ref : (Cout, K)      bf16
#   c_ref : (K, TM)        bf16   (im2col columns, lane-dense along M)
#   o_ref : (Cout, TM)     bf16 / f32
# ---------------------------------------------------------------------------
def _gemm_leaky_kernel(w_ref, c_ref, o_ref):
    # Conv (as GEMM) + LeakyReLU(0.2)
    acc = jnp.dot(w_ref[...], c_ref[...], preferred_element_type=jnp.float32)
    o_ref[...] = jnp.maximum(acc, LEAKY_SLOPE * acc).astype(o_ref.dtype)


def _gemm_bn_leaky_kernel(w_ref, c_ref, g_ref, b_ref, o_ref):
    # Conv (as GEMM) + training-mode BatchNorm2d (biased var over N,H,W)
    # + LeakyReLU(0.2).  Columns of `acc` are ordered (b, h, w), so reducing
    # over axis=-1 is exactly the per-channel batch statistic.
    # NOTE: correctness of the batch stats relies on this being a single
    # full-array block; a large-batch v7x variant would use a two-pass scheme.
    acc = jnp.dot(w_ref[...], c_ref[...], preferred_element_type=jnp.float32)
    m = jnp.mean(acc, axis=-1, keepdims=True)           # (Cout, 1)
    d = acc - m
    v = jnp.mean(d * d, axis=-1, keepdims=True)         # (Cout, 1)
    y = d * jax.lax.rsqrt(v + BN_EPS) * g_ref[...] + b_ref[...]
    o_ref[...] = jnp.maximum(y, LEAKY_SLOPE * y).astype(o_ref.dtype)


def _gemm_bias_sigmoid_kernel(w_ref, c_ref, b_ref, o_ref):
    # Final Conv (with bias) + Sigmoid (stable: exp of non-positive only).
    acc = jnp.dot(w_ref[...], c_ref[...], preferred_element_type=jnp.float32)
    acc = acc + b_ref[...]
    z = jnp.exp(-jnp.abs(acc))
    sig = jnp.where(acc >= 0.0, 1.0, z) / (1.0 + z)
    o_ref[...] = sig.astype(o_ref.dtype)


# ---------------------------------------------------------------------------
# pallas_call wrappers
# ---------------------------------------------------------------------------
def _nbytes(a):
    return int(math.prod(a.shape)) * jnp.dtype(a.dtype).itemsize


def _pick_tm(m):
    # Largest lane-aligned tile that divides M; fall back to the full axis.
    for tm in (512, 256, 128):
        if m >= tm and m % tm == 0:
            return tm
    return m


def _gemm_call(kernel, w, cols, extras, out_dtype, transcendentals=0):
    """M-tiled, megacore-parallel GEMM + fused epilogue (no cross-tile deps)."""
    cout, k = w.shape
    _, m = cols.shape
    tm = _pick_tm(m)
    grid = (m // tm,)
    in_specs = [pl.BlockSpec((cout, k), lambda i: (0, 0)),
                pl.BlockSpec((k, tm), lambda i: (0, i))]
    in_specs += [pl.BlockSpec(e.shape, lambda i: (0, 0)) for e in extras]
    flops = 2 * m * k * cout
    bytes_accessed = (_nbytes(w) + _nbytes(cols) + sum(_nbytes(e) for e in extras)
                      + m * cout * jnp.dtype(out_dtype).itemsize)
    return pl.pallas_call(
        kernel,
        grid=grid,
        out_shape=jax.ShapeDtypeStruct((cout, m), out_dtype),
        in_specs=in_specs,
        out_specs=pl.BlockSpec((cout, tm), lambda i: (0, i)),
        compiler_params=pltpu.CompilerParams(
            dimension_semantics=("parallel",)),
        cost_estimate=pl.CostEstimate(flops=int(flops),
                                      transcendentals=int(transcendentals),
                                      bytes_accessed=int(bytes_accessed)),
    )(w, cols, *extras)


def _gemm_bn_call(w, cols, gamma, beta):
    """Single full-array block so in-kernel BatchNorm batch stats are exact."""
    cout, k = w.shape
    _, m = cols.shape
    flops = 2 * m * k * cout
    bytes_accessed = (_nbytes(w) + _nbytes(cols) + _nbytes(gamma) + _nbytes(beta)
                      + m * cout * 2)
    return pl.pallas_call(
        _gemm_bn_leaky_kernel,
        grid=(1,),
        out_shape=jax.ShapeDtypeStruct((cout, m), jnp.bfloat16),
        in_specs=[pl.BlockSpec((cout, k), lambda i: (0, 0)),
                  pl.BlockSpec((k, m), lambda i: (0, 0)),
                  pl.BlockSpec((cout, 1), lambda i: (0, 0)),
                  pl.BlockSpec((cout, 1), lambda i: (0, 0))],
        out_specs=pl.BlockSpec((cout, m), lambda i: (0, 0)),
        compiler_params=pltpu.CompilerParams(
            dimension_semantics=("arbitrary",)),
        cost_estimate=pl.CostEstimate(flops=int(flops),
                                      transcendentals=int(cout),
                                      bytes_accessed=int(bytes_accessed)),
    )(w, cols, gamma, beta)


# ---------------------------------------------------------------------------
# Glue: embedding lookup, im2col (transposed), parameter setup
# ---------------------------------------------------------------------------
def _im2col_t(x, k, stride, pad):
    """x: (C, B, H, W) -> colsT: (k*k*C, B*Ho*Wo); K ordered (kh, kw, c)."""
    C, B, H, W = x.shape
    if pad:
        x = jnp.pad(x, ((0, 0), (0, 0), (pad, pad), (pad, pad)))
    Ho = (H + 2 * pad - k) // stride + 1
    Wo = (W + 2 * pad - k) // stride + 1
    patches = []
    for i in range(k):
        for j in range(k):
            patches.append(
                jax.lax.slice(
                    x,
                    (0, 0, i, j),
                    (C, B, i + (Ho - 1) * stride + 1, j + (Wo - 1) * stride + 1),
                    (1, 1, stride, stride),
                )
            )
    p = jnp.stack(patches, axis=0)                  # (k*k, C, B, Ho, Wo)
    return p.reshape(k * k * C, B * Ho * Wo), Ho, Wo


def _conv_w_t(key, cout, cin, k=4, scale=0.05):
    # PyTorch conv weight (Cout, Cin, kh, kw) -> (Cout, kh*kw*Cin), matching
    # the (kh, kw, c) ordering produced by _im2col_t.
    w = jax.random.normal(key, (cout, cin, k, k), jnp.float32) * scale
    return jnp.transpose(w, (0, 2, 3, 1)).reshape(cout, k * k * cin)


def init_params(key, in_channels, nf, num_classes, img_size):
    ks = jax.random.split(key, 14)
    p = {
        "embed": jax.random.normal(
            ks[0], (num_classes, img_size * img_size), jnp.float32),
        "w1": _conv_w_t(ks[1], nf, in_channels + 1),
        "w2": _conv_w_t(ks[2], nf * 2, nf),
        "g2": 1.0 + 0.1 * jax.random.normal(ks[3], (nf * 2, 1), jnp.float32),
        "b2": 0.1 * jax.random.normal(ks[4], (nf * 2, 1), jnp.float32),
        "w3": _conv_w_t(ks[5], nf * 4, nf * 2),
        "g3": 1.0 + 0.1 * jax.random.normal(ks[6], (nf * 4, 1), jnp.float32),
        "b3": 0.1 * jax.random.normal(ks[7], (nf * 4, 1), jnp.float32),
        "w4": _conv_w_t(ks[8], nf * 8, nf * 4),
        "g4": 1.0 + 0.1 * jax.random.normal(ks[9], (nf * 8, 1), jnp.float32),
        "b4": 0.1 * jax.random.normal(ks[10], (nf * 8, 1), jnp.float32),
        "w5": _conv_w_t(ks[11], 1, nf * 8),
        "b5": 0.1 * jax.random.normal(ks[12], (1, 1), jnp.float32),
    }
    return p


# ---------------------------------------------------------------------------
# Forward pass (matches Discriminator.forward)
# ---------------------------------------------------------------------------
def discriminator_forward(params, x_nchw, labels, img_size):
    B = x_nchw.shape[0]

    # nn.Embedding(labels).view(B, 1, img, img), concat along channel dim.
    emb = jnp.take(params["embed"], labels, axis=0).reshape(B, 1, img_size, img_size)
    x = jnp.concatenate([x_nchw.astype(jnp.float32), emb], axis=1)   # (B, C+1, H, W)
    # Internal layout: (C, B, H, W) in bf16 -> lane-dense transposed GEMMs.
    x = jnp.transpose(x, (1, 0, 2, 3)).astype(jnp.bfloat16)

    # Conv(C+1 -> nf, 4, s2, p1, no bias) + LeakyReLU     (M-tiled, parallel)
    cols, Ho, Wo = _im2col_t(x, 4, 2, 1)
    y = _gemm_call(_gemm_leaky_kernel,
                   params["w1"].astype(jnp.bfloat16), cols, (),
                   out_dtype=jnp.bfloat16)
    x = y.reshape(-1, B, Ho, Wo)

    # Three Conv + BatchNorm + LeakyReLU blocks (single-block for exact stats)
    for i in (2, 3, 4):
        cols, Ho, Wo = _im2col_t(x, 4, 2, 1)
        y = _gemm_bn_call(params[f"w{i}"].astype(jnp.bfloat16), cols,
                          params[f"g{i}"], params[f"b{i}"])
        x = y.reshape(-1, B, Ho, Wo)

    # Final Conv(nf*8 -> 1, 4, s1, p0, bias) + Sigmoid
    cols, Ho, Wo = _im2col_t(x, 4, 1, 0)                  # M = B
    y = _gemm_call(_gemm_bias_sigmoid_kernel,
                   params["w5"].astype(jnp.bfloat16), cols, (params["b5"],),
                   out_dtype=jnp.float32, transcendentals=cols.shape[1])
    # (1, B) -> NCHW (B, 1, 1, 1)
    return y.reshape(B, 1, 1, 1)


# ---------------------------------------------------------------------------
if __name__ == "__main__":
    key = jax.random.PRNGKey(0)
    # 64 -> 32 -> 16 -> 8 -> 4 -> 1 (img_size must be 64 for this architecture)
    B, IN_CH, NF, NUM_CLASSES, IMG = 2, 3, 8, 10, 64

    pkey, xkey, lkey = jax.random.split(key, 3)
    params = init_params(pkey, IN_CH, NF, NUM_CLASSES, IMG)
    x = jax.random.normal(xkey, (B, IN_CH, IMG, IMG), jnp.float32)
    labels = jax.random.randint(lkey, (B,), 0, NUM_CLASSES)

    fwd = jax.jit(functools.partial(discriminator_forward, img_size=IMG))
    out = jax.block_until_ready(fwd(params, x, labels))

    assert out.shape == (B, 1, 1, 1), out.shape
    assert bool(jnp.all(jnp.isfinite(out)))
    assert bool(jnp.all((out >= 0.0) & (out <= 1.0)))
    print("KERNEL_OK")
</pallas_src>

<mosaic_0001>
module attributes {stable_mosaic.version = 11 : i64} {
  func.func @_gemm_leaky_kernel(%arg0: i32, %arg1: memref<8x64xbf16, #tpu.memory_space<vmem>>, %arg2: memref<64x512xbf16, #tpu.memory_space<vmem>>, %arg3: memref<8x512xbf16, #tpu.memory_space<vmem>>) attributes {dimension_semantics = [#tpu.dimension_semantics<parallel>], iteration_bounds = array<i64: 4>, scalar_prefetch = 0 : i64, scratch_operands = 0 : i64, tpu.core_type = #tpu.core_type<tc>, window_params = [{pipeline_mode = #tpu.pipeline_mode<synchronous>, transform_indices = @transform_0, window_bounds = array<i64: 8, 64>}, {transform_indices = @transform_1, window_bounds = array<i64: 64, 512>}, {transform_indices = @transform_2, window_bounds = array<i64: 8, 512>}]} {
    %c0 = arith.constant 0 : index
    %c0_0 = arith.constant 0 : index
    %0 = vector.load %arg1[%c0, %c0_0] : memref<8x64xbf16, #tpu.memory_space<vmem>>, vector<8x64xbf16>
    %c0_1 = arith.constant 0 : index
    %c0_2 = arith.constant 0 : index
    %1 = vector.load %arg2[%c0_1, %c0_2] : memref<64x512xbf16, #tpu.memory_space<vmem>>, vector<64x512xbf16>
    %cst = arith.constant dense<0.000000e+00> : vector<8x512xf32>
    %2 = tpu.matmul %0, %1, %cst {dimension_numbers = #tpu.dot_dimension_numbers<[1], [0], [0], [1], [0, 0, 1, 1], [], []>} : vector<8x64xbf16>, vector<64x512xbf16>, vector<8x512xf32> -> vector<8x512xf32>
    %cst_3 = arith.constant 2.000000e-01 : f32
    %3 = vector.broadcast %cst_3 : f32 to vector<8x512xf32>
    %4 = arith.mulf %3, %2 : vector<8x512xf32>
    %5 = arith.maximumf %2, %4 : vector<8x512xf32>
    %6 = arith.truncf %5 : vector<8x512xf32> to vector<8x512xbf16>
    %c0_4 = arith.constant 0 : index
    %c0_5 = arith.constant 0 : index
    %7 = vector.load %arg3[%c0_4, %c0_5] : memref<8x512xbf16, #tpu.memory_space<vmem>>, vector<8x512xbf16>
    tpu.vector_store %arg3[%c0_4, %c0_5], %6 {strides = array<i32>} : memref<8x512xbf16, #tpu.memory_space<vmem>>, vector<8x512xbf16>,
    return
  }
  func.func @transform_0(%arg0: i32) -> (i32, i32) {
    %c0_i32 = arith.constant 0 : i32
    %c0_i32_0 = arith.constant 0 : i32
    %c0_i32_1 = arith.constant 0 : i32
    return %c0_i32, %c0_i32_0 : i32, i32
  }
  func.func @transform_1(%arg0: i32) -> (i32, i32) {
    %c0_i32 = arith.constant 0 : i32
    %c0_i32_0 = arith.constant 0 : i32
    return %c0_i32, %arg0 : i32, i32
  }
  func.func @transform_2(%arg0: i32) -> (i32, i32) {
    %c0_i32 = arith.constant 0 : i32
    %c0_i32_0 = arith.constant 0 : i32
    return %c0_i32, %arg0 : i32, i32
  }
}

module attributes {stable_mosaic.version = 11 : i64} {
  func.func @_gemm_bn_leaky_kernel(%arg0: i32, %arg1: memref<16x128xbf16, #tpu.memory_space<vmem>>, %arg2: memref<128x512xbf16, #tpu.memory_space<vmem>>, %arg3: memref<16x1xf32, #tpu.memory_space<vmem>>, %arg4: memref<16x1xf32, #tpu.memory_space<vmem>>, %arg5: memref<16x512xbf16, #tpu.memory_space<vmem>>) attributes {dimension_semantics = [#tpu.dimension_semantics<arbitrary>], iteration_bounds = array<i64: 1>, scalar_prefetch = 0 : i64, scratch_operands = 0 : i64, tpu.core_type = #tpu.core_type<tc>, window_params = [{pipeline_mode = #tpu.pipeline_mode<synchronous>, transform_indices = @transform_0, window_bounds = array<i64: 16, 128>}, {pipeline_mode = #tpu.pipeline_mode<synchronous>, transform_indices = @transform_1, window_bounds = array<i64: 128, 512>}, {pipeline_mode = #tpu.pipeline_mode<synchronous>, transform_indices = @transform_2, window_bounds = array<i64: 16, 1>}, {pipeline_mode = #tpu.pipeline_mode<synchronous>, transform_indices = @transform_3, window_bounds = array<i64: 16, 1>}, {pipeline_mode = #tpu.pipeline_mode<synchronous>, transform_indices = @transform_4, window_bounds = array<i64: 16, 512>}]} {
    %c0 = arith.constant 0 : index
    %c0_0 = arith.constant 0 : index
    %0 = vector.load %arg1[%c0, %c0_0] : memref<16x128xbf16, #tpu.memory_space<vmem>>, vector<16x128xbf16>
    %c0_1 = arith.constant 0 : index
    %c0_2 = arith.constant 0 : index
    %1 = vector.load %arg2[%c0_1, %c0_2] : memref<128x512xbf16, #tpu.memory_space<vmem>>, vector<128x512xbf16>
    %cst = arith.constant dense<0.000000e+00> : vector<16x512xf32>
    %2 = tpu.matmul %0, %1, %cst {dimension_numbers = #tpu.dot_dimension_numbers<[1], [0], [0], [1], [0, 0, 1, 1], [], []>} : vector<16x128xbf16>, vector<128x512xbf16>, vector<16x512xf32> -> vector<16x512xf32>
    %cst_3 = arith.constant dense<0.000000e+00> : vector<16xf32>
    %3 = vector.multi_reduction <add>, %2, %cst_3 [1] : vector<16x512xf32> to vector<16xf32>
    %4 = vector.shape_cast %3 : vector<16xf32> to vector<16x1xf32>
    %cst_4 = arith.constant 5.120000e+02 : f32
    %5 = vector.broadcast %cst_4 : f32 to vector<16x1xf32>
    %6 = arith.divf %4, %5 : vector<16x1xf32>
    %7 = vector.broadcast %6 : vector<16x1xf32> to vector<16x512xf32>
    %8 = arith.subf %2, %7 : vector<16x512xf32>
    %9 = arith.mulf %8, %8 : vector<16x512xf32>
    %cst_5 = arith.constant dense<0.000000e+00> : vector<16xf32>
    %10 = vector.multi_reduction <add>, %9, %cst_5 [1] : vector<16x512xf32> to vector<16xf32>
    %11 = vector.shape_cast %10 : vector<16xf32> to vector<16x1xf32>
    %cst_6 = arith.constant 5.120000e+02 : f32
    %12 = vector.broadcast %cst_6 : f32 to vector<16x1xf32>
    %13 = arith.divf %11, %12 : vector<16x1xf32>
    %cst_7 = arith.constant 9.99999974E-6 : f32
    %14 = vector.broadcast %cst_7 : f32 to vector<16x1xf32>
    %15 = arith.addf %13, %14 : vector<16x1xf32>
    %16 = math.rsqrt %15 : vector<16x1xf32>
    %17 = vector.broadcast %16 : vector<16x1xf32> to vector<16x512xf32>
    %18 = arith.mulf %8, %17 : vector<16x512xf32>
    %c0_8 = arith.constant 0 : index
    %c0_9 = arith.constant 0 : index
    %19 = vector.load %arg3[%c0_8, %c0_9] : memref<16x1xf32, #tpu.memory_space<vmem>>, vector<16x1xf32>
    %20 = vector.broadcast %19 : vector<16x1xf32> to vector<16x512xf32>
    %21 = arith.mulf %18, %20 : vector<16x512xf32>
    %c0_10 = arith.constant 0 : index
    %c0_11 = arith.constant 0 : index
    %22 = vector.load %arg4[%c0_10, %c0_11] : memref<16x1xf32, #tpu.memory_space<vmem>>, vector<16x1xf32>
    %23 = vector.broadcast %22 : vector<16x1xf32> to vector<16x512xf32>
    %24 = arith.addf %21, %23 : vector<16x512xf32>
    %cst_12 = arith.constant 2.000000e-01 : f32
    %25 = vector.broadcast %cst_12 : f32 to vector<16x512xf32>
    %26 = arith.mulf %25, %24 : vector<16x512xf32>
    %27 = arith.maximumf %24, %26 : vector<16x512xf32>
    %28 = arith.truncf %27 : vector<16x512xf32> to vector<16x512xbf16>
    %c0_13 = arith.constant 0 : index
    %c0_14 = arith.constant 0 : index
    %29 = vector.load %arg5[%c0_13, %c0_14] : memref<16x512xbf16, #tpu.memory_space<vmem>>, vector<16x512xbf16>
    tpu.vector_store %arg5[%c0_13, %c0_14], %28 {strides = array<i32>} : memref<16x512xbf16, #tpu.memory_space<vmem>>, vector<16x512xbf16>,
    return
  }
  func.func @transform_0(%arg0: i32) -> (i32, i32) {
    %c0_i32 = arith.constant 0 : i32
    %c0_i32_0 = arith.constant 0 : i32
    %c0_i32_1 = arith.constant 0 : i32
    return %c0_i32, %c0_i32_0 : i32, i32
  }
  func.func @transform_1(%arg0: i32) -> (i32, i32) {
    %c0_i32 = arith.constant 0 : i32
    %c0_i32_0 = arith.constant 0 : i32
    %c0_i32_1 = arith.constant 0 : i32
    return %c0_i32, %c0_i32_0 : i32, i32
  }
  func.func @transform_2(%arg0: i32) -> (i32, i32) {
    %c0_i32 = arith.constant 0 : i32
    %c0_i32_0 = arith.constant 0 : i32
    %c0_i32_1 = arith.constant 0 : i32
    return %c0_i32, %c0_i32_0 : i32, i32
  }
  func.func @transform_3(%arg0: i32) -> (i32, i32) {
    %c0_i32 = arith.constant 0 : i32
    %c0_i32_0 = arith.constant 0 : i32
    %c0_i32_1 = arith.constant 0 : i32
    return %c0_i32, %c0_i32_0 : i32, i32
  }
  func.func @transform_4(%arg0: i32) -> (i32, i32) {
    %c0_i32 = arith.constant 0 : i32
    %c0_i32_0 = arith.constant 0 : i32
    %c0_i32_1 = arith.constant 0 : i32
    return %c0_i32, %c0_i32_0 : i32, i32
  }
}

module attributes {stable_mosaic.version = 11 : i64} {
  func.func @_gemm_bn_leaky_kernel(%arg0: i32, %arg1: memref<32x256xbf16, #tpu.memory_space<vmem>>, %arg2: memref<256x128xbf16, #tpu.memory_space<vmem>>, %arg3: memref<32x1xf32, #tpu.memory_space<vmem>>, %arg4: memref<32x1xf32, #tpu.memory_space<vmem>>, %arg5: memref<32x128xbf16, #tpu.memory_space<vmem>>) attributes {dimension_semantics = [#tpu.dimension_semantics<arbitrary>], iteration_bounds = array<i64: 1>, scalar_prefetch = 0 : i64, scratch_operands = 0 : i64, tpu.core_type = #tpu.core_type<tc>, window_params = [{pipeline_mode = #tpu.pipeline_mode<synchronous>, transform_indices = @transform_0, window_bounds = array<i64: 32, 256>}, {pipeline_mode = #tpu.pipeline_mode<synchronous>, transform_indices = @transform_1, window_bounds = array<i64: 256, 128>}, {pipeline_mode = #tpu.pipeline_mode<synchronous>, transform_indices = @transform_2, window_bounds = array<i64: 32, 1>}, {pipeline_mode = #tpu.pipeline_mode<synchronous>, transform_indices = @transform_3, window_bounds = array<i64: 32, 1>}, {pipeline_mode = #tpu.pipeline_mode<synchronous>, transform_indices = @transform_4, window_bounds = array<i64: 32, 128>}]} {
    %c0 = arith.constant 0 : index
    %c0_0 = arith.constant 0 : index
    %0 = vector.load %arg1[%c0, %c0_0] : memref<32x256xbf16, #tpu.memory_space<vmem>>, vector<32x256xbf16>
    %c0_1 = arith.constant 0 : index
    %c0_2 = arith.constant 0 : index
    %1 = vector.load %arg2[%c0_1, %c0_2] : memref<256x128xbf16, #tpu.memory_space<vmem>>, vector<256x128xbf16>
    %cst = arith.constant dense<0.000000e+00> : vector<32x128xf32>
    %2 = tpu.matmul %0, %1, %cst {dimension_numbers = #tpu.dot_dimension_numbers<[1], [0], [0], [1], [0, 0, 1, 1], [], []>} : vector<32x256xbf16>, vector<256x128xbf16>, vector<32x128xf32> -> vector<32x128xf32>
    %cst_3 = arith.constant dense<0.000000e+00> : vector<32xf32>
    %3 = vector.multi_reduction <add>, %2, %cst_3 [1] : vector<32x128xf32> to vector<32xf32>
    %4 = vector.shape_cast %3 : vector<32xf32> to vector<32x1xf32>
    %cst_4 = arith.constant 1.280000e+02 : f32
    %5 = vector.broadcast %cst_4 : f32 to vector<32x1xf32>
    %6 = arith.divf %4, %5 : vector<32x1xf32>
    %7 = vector.broadcast %6 : vector<32x1xf32> to vector<32x128xf32>
    %8 = arith.subf %2, %7 : vector<32x128xf32>
    %9 = arith.mulf %8, %8 : vector<32x128xf32>
    %cst_5 = arith.constant dense<0.000000e+00> : vector<32xf32>
    %10 = vector.multi_reduction <add>, %9, %cst_5 [1] : vector<32x128xf32> to vector<32xf32>
    %11 = vector.shape_cast %10 : vector<32xf32> to vector<32x1xf32>
    %cst_6 = arith.constant 1.280000e+02 : f32
    %12 = vector.broadcast %cst_6 : f32 to vector<32x1xf32>
    %13 = arith.divf %11, %12 : vector<32x1xf32>
    %cst_7 = arith.constant 9.99999974E-6 : f32
    %14 = vector.broadcast %cst_7 : f32 to vector<32x1xf32>
    %15 = arith.addf %13, %14 : vector<32x1xf32>
    %16 = math.rsqrt %15 : vector<32x1xf32>
    %17 = vector.broadcast %16 : vector<32x1xf32> to vector<32x128xf32>
    %18 = arith.mulf %8, %17 : vector<32x128xf32>
    %c0_8 = arith.constant 0 : index
    %c0_9 = arith.constant 0 : index
    %19 = vector.load %arg3[%c0_8, %c0_9] : memref<32x1xf32, #tpu.memory_space<vmem>>, vector<32x1xf32>
    %20 = vector.broadcast %19 : vector<32x1xf32> to vector<32x128xf32>
    %21 = arith.mulf %18, %20 : vector<32x128xf32>
    %c0_10 = arith.constant 0 : index
    %c0_11 = arith.constant 0 : index
    %22 = vector.load %arg4[%c0_10, %c0_11] : memref<32x1xf32, #tpu.memory_space<vmem>>, vector<32x1xf32>
    %23 = vector.broadcast %22 : vector<32x1xf32> to vector<32x128xf32>
    %24 = arith.addf %21, %23 : vector<32x128xf32>
    %cst_12 = arith.constant 2.000000e-01 : f32
    %25 = vector.broadcast %cst_12 : f32 to vector<32x128xf32>
    %26 = arith.mulf %25, %24 : vector<32x128xf32>
    %27 = arith.maximumf %24, %26 : vector<32x128xf32>
    %28 = arith.truncf %27 : vector<32x128xf32> to vector<32x128xbf16>
    %c0_13 = arith.constant 0 : index
    %c0_14 = arith.constant 0 : index
    %29 = vector.load %arg5[%c0_13, %c0_14] : memref<32x128xbf16, #tpu.memory_space<vmem>>, vector<32x128xbf16>
    tpu.vector_store %arg5[%c0_13, %c0_14], %28 {strides = array<i32>} : memref<32x128xbf16, #tpu.memory_space<vmem>>, vector<32x128xbf16>,
    return
  }
  func.func @transform_0(%arg0: i32) -> (i32, i32) {
    %c0_i32 = arith.constant 0 : i32
    %c0_i32_0 = arith.constant 0 : i32
    %c0_i32_1 = arith.constant 0 : i32
    return %c0_i32, %c0_i32_0 : i32, i32
  }
  func.func @transform_1(%arg0: i32) -> (i32, i32) {
    %c0_i32 = arith.constant 0 : i32
    %c0_i32_0 = arith.constant 0 : i32
    %c0_i32_1 = arith.constant 0 : i32
    return %c0_i32, %c0_i32_0 : i32, i32
  }
  func.func @transform_2(%arg0: i32) -> (i32, i32) {
    %c0_i32 = arith.constant 0 : i32
    %c0_i32_0 = arith.constant 0 : i32
    %c0_i32_1 = arith.constant 0 : i32
    return %c0_i32, %c0_i32_0 : i32, i32
  }
  func.func @transform_3(%arg0: i32) -> (i32, i32) {
    %c0_i32 = arith.constant 0 : i32
    %c0_i32_0 = arith.constant 0 : i32
    %c0_i32_1 = arith.constant 0 : i32
    return %c0_i32, %c0_i32_0 : i32, i32
  }
  func.func @transform_4(%arg0: i32) -> (i32, i32) {
    %c0_i32 = arith.constant 0 : i32
    %c0_i32_0 = arith.constant 0 : i32
    %c0_i32_1 = arith.constant 0 : i32
    return %c0_i32, %c0_i32_0 : i32, i32
  }
}

module attributes {stable_mosaic.version = 11 : i64} {
  func.func @_gemm_bn_leaky_kernel(%arg0: i32, %arg1: memref<64x512xbf16, #tpu.memory_space<vmem>>, %arg2: memref<512x32xbf16, #tpu.memory_space<vmem>>, %arg3: memref<64x1xf32, #tpu.memory_space<vmem>>, %arg4: memref<64x1xf32, #tpu.memory_space<vmem>>, %arg5: memref<64x32xbf16, #tpu.memory_space<vmem>>) attributes {dimension_semantics = [#tpu.dimension_semantics<arbitrary>], iteration_bounds = array<i64: 1>, scalar_prefetch = 0 : i64, scratch_operands = 0 : i64, tpu.core_type = #tpu.core_type<tc>, window_params = [{pipeline_mode = #tpu.pipeline_mode<synchronous>, transform_indices = @transform_0, window_bounds = array<i64: 64, 512>}, {pipeline_mode = #tpu.pipeline_mode<synchronous>, transform_indices = @transform_1, window_bounds = array<i64: 512, 32>}, {pipeline_mode = #tpu.pipeline_mode<synchronous>, transform_indices = @transform_2, window_bounds = array<i64: 64, 1>}, {pipeline_mode = #tpu.pipeline_mode<synchronous>, transform_indices = @transform_3, window_bounds = array<i64: 64, 1>}, {pipeline_mode = #tpu.pipeline_mode<synchronous>, transform_indices = @transform_4, window_bounds = array<i64: 64, 32>}]} {
    %c0 = arith.constant 0 : index
    %c0_0 = arith.constant 0 : index
    %0 = vector.load %arg1[%c0, %c0_0] : memref<64x512xbf16, #tpu.memory_space<vmem>>, vector<64x512xbf16>
    %c0_1 = arith.constant 0 : index
    %c0_2 = arith.constant 0 : index
    %1 = vector.load %arg2[%c0_1, %c0_2] : memref<512x32xbf16, #tpu.memory_space<vmem>>, vector<512x32xbf16>
    %cst = arith.constant dense<0.000000e+00> : vector<64x32xf32>
    %2 = tpu.matmul %0, %1, %cst {dimension_numbers = #tpu.dot_dimension_numbers<[1], [0], [0], [1], [0, 0, 1, 1], [], []>} : vector<64x512xbf16>, vector<512x32xbf16>, vector<64x32xf32> -> vector<64x32xf32>
    %cst_3 = arith.constant dense<0.000000e+00> : vector<64xf32>
    %3 = vector.multi_reduction <add>, %2, %cst_3 [1] : vector<64x32xf32> to vector<64xf32>
    %4 = vector.shape_cast %3 : vector<64xf32> to vector<64x1xf32>
    %cst_4 = arith.constant 3.200000e+01 : f32
    %5 = vector.broadcast %cst_4 : f32 to vector<64x1xf32>
    %6 = arith.divf %4, %5 : vector<64x1xf32>
    %7 = vector.broadcast %6 : vector<64x1xf32> to vector<64x32xf32>
    %8 = arith.subf %2, %7 : vector<64x32xf32>
    %9 = arith.mulf %8, %8 : vector<64x32xf32>
    %cst_5 = arith.constant dense<0.000000e+00> : vector<64xf32>
    %10 = vector.multi_reduction <add>, %9, %cst_5 [1] : vector<64x32xf32> to vector<64xf32>
    %11 = vector.shape_cast %10 : vector<64xf32> to vector<64x1xf32>
    %cst_6 = arith.constant 3.200000e+01 : f32
    %12 = vector.broadcast %cst_6 : f32 to vector<64x1xf32>
    %13 = arith.divf %11, %12 : vector<64x1xf32>
    %cst_7 = arith.constant 9.99999974E-6 : f32
    %14 = vector.broadcast %cst_7 : f32 to vector<64x1xf32>
    %15 = arith.addf %13, %14 : vector<64x1xf32>
    %16 = math.rsqrt %15 : vector<64x1xf32>
    %17 = vector.broadcast %16 : vector<64x1xf32> to vector<64x32xf32>
    %18 = arith.mulf %8, %17 : vector<64x32xf32>
    %c0_8 = arith.constant 0 : index
    %c0_9 = arith.constant 0 : index
    %19 = vector.load %arg3[%c0_8, %c0_9] : memref<64x1xf32, #tpu.memory_space<vmem>>, vector<64x1xf32>
    %20 = vector.broadcast %19 : vector<64x1xf32> to vector<64x32xf32>
    %21 = arith.mulf %18, %20 : vector<64x32xf32>
    %c0_10 = arith.constant 0 : index
    %c0_11 = arith.constant 0 : index
    %22 = vector.load %arg4[%c0_10, %c0_11] : memref<64x1xf32, #tpu.memory_space<vmem>>, vector<64x1xf32>
    %23 = vector.broadcast %22 : vector<64x1xf32> to vector<64x32xf32>
    %24 = arith.addf %21, %23 : vector<64x32xf32>
    %cst_12 = arith.constant 2.000000e-01 : f32
    %25 = vector.broadcast %cst_12 : f32 to vector<64x32xf32>
    %26 = arith.mulf %25, %24 : vector<64x32xf32>
    %27 = arith.maximumf %24, %26 : vector<64x32xf32>
    %28 = arith.truncf %27 : vector<64x32xf32> to vector<64x32xbf16>
    %c0_13 = arith.constant 0 : index
    %c0_14 = arith.constant 0 : index
    %29 = vector.load %arg5[%c0_13, %c0_14] : memref<64x32xbf16, #tpu.memory_space<vmem>>, vector<64x32xbf16>
    tpu.vector_store %arg5[%c0_13, %c0_14], %28 {strides = array<i32>} : memref<64x32xbf16, #tpu.memory_space<vmem>>, vector<64x32xbf16>,
    return
  }
  func.func @transform_0(%arg0: i32) -> (i32, i32) {
    %c0_i32 = arith.constant 0 : i32
    %c0_i32_0 = arith.constant 0 : i32
    %c0_i32_1 = arith.constant 0 : i32
    return %c0_i32, %c0_i32_0 : i32, i32
  }
  func.func @transform_1(%arg0: i32) -> (i32, i32) {
    %c0_i32 = arith.constant 0 : i32
    %c0_i32_0 = arith.constant 0 : i32
    %c0_i32_1 = arith.constant 0 : i32
    return %c0_i32, %c0_i32_0 : i32, i32
  }
  func.func @transform_2(%arg0: i32) -> (i32, i32) {
    %c0_i32 = arith.constant 0 : i32
    %c0_i32_0 = arith.constant 0 : i32
    %c0_i32_1 = arith.constant 0 : i32
    return %c0_i32, %c0_i32_0 : i32, i32
  }
  func.func @transform_3(%arg0: i32) -> (i32, i32) {
    %c0_i32 = arith.constant 0 : i32
    %c0_i32_0 = arith.constant 0 : i32
    %c0_i32_1 = arith.constant 0 : i32
    return %c0_i32, %c0_i32_0 : i32, i32
  }
  func.func @transform_4(%arg0: i32) -> (i32, i32) {
    %c0_i32 = arith.constant 0 : i32
    %c0_i32_0 = arith.constant 0 : i32
    %c0_i32_1 = arith.constant 0 : i32
    return %c0_i32, %c0_i32_0 : i32, i32
  }
}

module attributes {stable_mosaic.version = 11 : i64} {
  func.func @_gemm_bias_sigmoid_kernel(%arg0: i32, %arg1: memref<1x1024xbf16, #tpu.memory_space<vmem>>, %arg2: memref<1024x2xbf16, #tpu.memory_space<vmem>>, %arg3: memref<1x1xf32, #tpu.memory_space<vmem>>, %arg4: memref<1x2xf32, #tpu.memory_space<vmem>>) attributes {dimension_semantics = [#tpu.dimension_semantics<parallel>], iteration_bounds = array<i64: 1>, scalar_prefetch = 0 : i64, scratch_operands = 0 : i64, tpu.core_type = #tpu.core_type<tc>, window_params = [{pipeline_mode = #tpu.pipeline_mode<synchronous>, transform_indices = @transform_0, window_bounds = array<i64: 1, 1024>}, {transform_indices = @transform_1, window_bounds = array<i64: 1024, 2>}, {pipeline_mode = #tpu.pipeline_mode<synchronous>, transform_indices = @transform_2, window_bounds = array<i64: 1, 1>}, {transform_indices = @transform_3, window_bounds = array<i64: 1, 2>}]} {
    %c0 = arith.constant 0 : index
    %c0_0 = arith.constant 0 : index
    %0 = vector.load %arg1[%c0, %c0_0] : memref<1x1024xbf16, #tpu.memory_space<vmem>>, vector<1x1024xbf16>
    %c0_1 = arith.constant 0 : index
    %c0_2 = arith.constant 0 : index
    %1 = vector.load %arg2[%c0_1, %c0_2] : memref<1024x2xbf16, #tpu.memory_space<vmem>>, vector<1024x2xbf16>
    %cst = arith.constant dense<0.000000e+00> : vector<1x2xf32>
    %2 = tpu.matmul %0, %1, %cst {dimension_numbers = #tpu.dot_dimension_numbers<[1], [0], [0], [1], [0, 0, 1, 1], [], []>} : vector<1x1024xbf16>, vector<1024x2xbf16>, vector<1x2xf32> -> vector<1x2xf32>
    %c0_3 = arith.constant 0 : index
    %c0_4 = arith.constant 0 : index
    %3 = vector.load %arg3[%c0_3, %c0_4] : memref<1x1xf32, #tpu.memory_space<vmem>>, vector<1x1xf32>
    %4 = vector.broadcast %3 : vector<1x1xf32> to vector<1x2xf32>
    %5 = arith.addf %2, %4 : vector<1x2xf32>
    %6 = math.absf %5 : vector<1x2xf32>
    %cst_5 = arith.constant 0.000000e+00 : f32
    %7 = vector.broadcast %cst_5 : f32 to vector<1x2xf32>
    %8 = arith.subf %7, %6 : vector<1x2xf32>
    %9 = math.exp %8 : vector<1x2xf32>
    %cst_6 = arith.constant 0.000000e+00 : f32
    %10 = vector.broadcast %cst_6 : f32 to vector<1x2xf32>
    %11 = arith.cmpf oge, %5, %10 : vector<1x2xf32>
    %cst_7 = arith.constant 1.000000e+00 : f32
    %12 = vector.broadcast %cst_7 : f32 to vector<1x2xf32>
    %13 = arith.select %11, %12, %9 : vector<1x2xi1>, vector<1x2xf32>
    %cst_8 = arith.constant 1.000000e+00 : f32
    %14 = vector.broadcast %cst_8 : f32 to vector<1x2xf32>
    %15 = arith.addf %14, %9 : vector<1x2xf32>
    %16 = arith.divf %13, %15 : vector<1x2xf32>
    %c0_9 = arith.constant 0 : index
    %c0_10 = arith.constant 0 : index
    %17 = vector.load %arg4[%c0_9, %c0_10] : memref<1x2xf32, #tpu.memory_space<vmem>>, vector<1x2xf32>
    tpu.vector_store %arg4[%c0_9, %c0_10], %16 {strides = array<i32>} : memref<1x2xf32, #tpu.memory_space<vmem>>, vector<1x2xf32>,
    return
  }
  func.func @transform_0(%arg0: i32) -> (i32, i32) {
    %c0_i32 = arith.constant 0 : i32
    %c0_i32_0 = arith.constant 0 : i32
    %c0_i32_1 = arith.constant 0 : i32
    return %c0_i32, %c0_i32_0 : i32, i32
  }
  func.func @transform_1(%arg0: i32) -> (i32, i32) {
    %c0_i32 = arith.constant 0 : i32
    %c0_i32_0 = arith.constant 0 : i32
    return %c0_i32, %arg0 : i32, i32
  }
  func.func @transform_2(%arg0: i32) -> (i32, i32) {
    %c0_i32 = arith.constant 0 : i32
    %c0_i32_0 = arith.constant 0 : i32
    %c0_i32_1 = arith.constant 0 : i32
    return %c0_i32, %c0_i32_0 : i32, i32
  }
  func.func @transform_3(%arg0: i32) -> (i32, i32) {
    %c0_i32 = arith.constant 0 : i32
    %c0_i32_0 = arith.constant 0 : i32
    return %c0_i32, %arg0 : i32, i32
  }
}

</mosaic_0001>

<llo_original>
// kernel: discriminator_forward.5
$region0: #{discriminator_forward.5}
  #allocation0 [shape = 'u32[]', space=smem, size = 0x4, offset = 0x4, fixed_abs, tag = 'smem constant byte address 0x4 - core index']
  #allocation1 [shape = 'u32[144,128]{1,0:T(1,128)}', space=vmem, size = 0x12000, scoped, tag = 'internal scratch']
  %s0 = inlined_call_operand.vmem [shape: bf16[8,64], index: 0, kind: input, shape index: {}]
  %s1 = inlined_call_operand.vmem [shape: bf16[64,2048], index: 1, kind: input, shape index: {}]
  %s2 = inlined_call_operand.vmem [shape: bf16[8,2048], index: 2, kind: output, shape index: {}]
  %s3 = sld [smem:[#allocation0]]
  $region64: #{discriminator_forward.5} parent=0
    _
  %s5 = ssub.s32 1, %s3
  %s6 = scalar_select 0, %s5, %s3
  $region1: #{discriminator_forward.5} parent=0
    #allocation2 [shape = 'u8[131072]{0}', space=vmem, size = 0x20000, scoped, tag = 'input window, operand 1']
    loop: start=0, step=1, limit=6
    $region2: #{discriminator_forward.5} parent=1 // loop_pre_header
      _
    $region3: #{discriminator_forward.5} parent=1 // loop_header
      %s8 = sphi 0, %s12
      %p9 = scmp.ge.s32.totalorder %s8, 6
      %s16 = sphi 0, %s16
      %s18 = sphi 0, %s16
      %s19 = sphi 0, %s18
      %s33 = sphi 0, %s19
      %s39 = sphi 0, %s41
      %s42 = sphi 0, %s39
      %s43 = sphi 0, %s42
      %s59 = sphi 0, %s43
      %s65 = sphi 0, %s67
      %s68 = sphi 0, %s65
      %s69 = sphi 0, %s68
      %s85 = sphi 0, %s69
    $region4: #{discriminator_forward.5} parent=1 // loop_header_branch
      %11 = sbr.rel (%p9) target = $region8
    $region5: #{discriminator_forward.5} parent=1 // loop_body
      %s13 = ssub.s32 %s8, 1
      %s14 = ssub.s32 %s8, 2
      %s15 = sadd.s32 %s8, 1
      %s17 = sadd.s32 %s16, 1
      %p20 = scmp.eq.s32.totalorder %s8, 3
      %p21 = scmp.ne.s32.totalorder %s16, %s18
      %p22 = scmp.eq.s32.totalorder %s8, 0
      %p23 = por %p21, %p22
      %p24 = scmp.ne.s32.totalorder %s16, %s18
      %p25 = scmp.eq.s32.totalorder %s13, 3
      %p26 = por %p24, %p25
      %p27 = scmp.ne.s32.totalorder %s18, %s19
      %p28 = scmp.eq.s32.totalorder %s13, 0
      %p29 = por %p27, %p28
      %p30 = scmp.ne.s32.totalorder %s18, %s19
      %p31 = scmp.eq.s32.totalorder %s14, 3
      %p32 = por %p30, %p31
      %p34 = scmp.ne.s32.totalorder %s19, %s33
      %p35 = scmp.eq.s32.totalorder %s14, 0
      %p36 = por %p34, %p35
      %s37 = ssub.s32 %s8, %s15
      %p38 = scmp.eq.s32.totalorder %s37, 0
      %s40 = sadd.s32 %s39, 1
      %s41 = scalar_select %p38, %s39, %s40
      %p44 = pneg %p38
      %p45 = scmp.eq.s32.totalorder %s8, 3
      %p46 = por %p44, %p45
      %p47 = scmp.ne.s32.totalorder %s39, %s42
      %p48 = scmp.eq.s32.totalorder %s8, 0
      %p49 = por %p47, %p48
      %p50 = scmp.ne.s32.totalorder %s39, %s42
      %p51 = scmp.eq.s32.totalorder %s13, 3
      %p52 = por %p50, %p51
      %p53 = scmp.ne.s32.totalorder %s42, %s43
      %p54 = scmp.eq.s32.totalorder %s13, 0
      %p55 = por %p53, %p54
      %p56 = scmp.ne.s32.totalorder %s42, %s43
      %p57 = scmp.eq.s32.totalorder %s14, 3
      %p58 = por %p56, %p57
      %p60 = scmp.ne.s32.totalorder %s43, %s59
      %p61 = scmp.eq.s32.totalorder %s14, 0
      %p62 = por %p60, %p61
      %s63 = ssub.s32 %s8, %s15
      %p64 = scmp.eq.s32.totalorder %s63, 0
      %s66 = sadd.s32 %s65, 1
      %s67 = scalar_select %p64, %s65, %s66
      %p70 = pneg %p64
      %p71 = scmp.eq.s32.totalorder %s8, 3
      %p72 = por %p70, %p71
      %p73 = scmp.ne.s32.totalorder %s65, %s68
      %p74 = scmp.eq.s32.totalorder %s8, 0
      %p75 = por %p73, %p74
      %p76 = scmp.ne.s32.totalorder %s65, %s68
      %p77 = scmp.eq.s32.totalorder %s13, 3
      %p78 = por %p76, %p77
      %p79 = scmp.ne.s32.totalorder %s68, %s69
      %p80 = scmp.eq.s32.totalorder %s13, 0
      %p81 = por %p79, %p80
      %p82 = scmp.ne.s32.totalorder %s68, %s69
      %p83 = scmp.eq.s32.totalorder %s14, 3
      %p84 = por %p82, %p83
      %p86 = scmp.ne.s32.totalorder %s69, %s85
      %p87 = scmp.eq.s32.totalorder %s14, 0
      %p88 = por %p86, %p87
      %p89 = scmp.le.s32.totalorder 1, %s8
      %p90 = scmp.lt.s32.totalorder %s8, 5
      %p91 = pnand %p89, %p90
      %p92 = pneg %p91
      // Predicated region
      $region9: #{discriminator_forward.5} parent=5 // pred_check
        _
      $region10: #{discriminator_forward.5} parent=5 // pred_check_branch
        %94 = sbr.rel (%p91) target = $region12
      $region11: #{discriminator_forward.5} parent=5 // pred_region
        %s95 = ssub.s32 %s8, 1
        // Predicated region
        $region13: #{discriminator_forward.5} parent=11 // pred_check
          %p96 = pneg %p29
        $region14: #{discriminator_forward.5} parent=11 // pred_check_branch
          %98 = sbr.rel (%p96) target = $region16
        $region15: #{discriminator_forward.5} parent=11 // pred_region
          _
        $region16: #{discriminator_forward.5} parent=11 // pred_fallthru
          _
      $region12: #{discriminator_forward.5} parent=5 // pred_fallthru
        _
      %p99 = scmp.lt.s32.totalorder %s8, 4
      // Predicated region
      $region17: #{discriminator_forward.5} parent=5 // pred_check
        %p100 = pneg %p99
      $region18: #{discriminator_forward.5} parent=5 // pred_check_branch
        %102 = sbr.rel (%p100) target = $region20
      $region19: #{discriminator_forward.5} parent=5 // pred_region
        // Predicated region
        $region21: #{discriminator_forward.5} parent=19 // pred_check
          %p103 = pneg %p49
        $region22: #{discriminator_forward.5} parent=19 // pred_check_branch
          %105 = sbr.rel (%p103) target = $region24
        $region23: #{discriminator_forward.5} parent=19 // pred_region
          %s106 = sand.u32 %s39, 1
          %s107 = sand.u32 %s39, 1
          %s108 = smul.addr %s107, 128
          %s109 = scalar_lea.vmem [#allocation2], %s108
          %s110 = smul.u32 4, %s8
          %s111 = smul.addr %s110, 4
          %s112 = scalar_lea.vmem %s1, %s111
          // Predicated region
          $region25: #{discriminator_forward.5} parent=23 // pred_check
            _
          $region26: #{discriminator_forward.5} parent=23 // pred_check_branch
            %114 = sbr.rel (0) target = $region28
          $region27: #{discriminator_forward.5} parent=23 // pred_region
            // Predicated region
            $region29: #{discriminator_forward.5} parent=27 // pred_check
              _
            $region30: #{discriminator_forward.5} parent=27 // pred_check_branch
              %116 = sbr.rel (0) target = $region32
            $region31: #{discriminator_forward.5} parent=27 // pred_region
              loop: start=0, step=1, limit=1
              $region33: #{discriminator_forward.5} parent=31 // loop_pre_header
                _
              $region34: #{discriminator_forward.5} parent=31 // loop_header
                %s118 = sphi 0, %s122
                %p119 = scmp.ge.s32.totalorder %s118, 1
                %s123 = sphi %s112, %s112
                %s124 = sphi %s109, %s109
              $region35: #{discriminator_forward.5} parent=31 // loop_header_branch
                %121 = sbr.rel (%p119) target = $region39
              $region36: #{discriminator_forward.5} parent=31 // loop_body
                %v125 = vld [vmem:[%s123] sm:$0xff]
                %126 = vst [vmem:[%s124] sm:$0xff] %v125
                %v127 = vld [vmem:[%s123 + $0x8] sm:$0xff]
                %128 = vst [vmem:[%s124 + $0x8] sm:$0xff] %v127
                %v129 = vld [vmem:[%s123 + $0x40] sm:$0xff]
                %130 = vst [vmem:[%s124 + $0x10] sm:$0xff] %v129
                %v131 = vld [vmem:[%s123 + $0x48] sm:$0xff]
                %132 = vst [vmem:[%s124 + $0x18] sm:$0xff] %v131
                %v133 = vld [vmem:[%s123 + $0x80] sm:$0xff]
                %134 = vst [vmem:[%s124 + $0x20] sm:$0xff] %v133
                %v135 = vld [vmem:[%s123 + $0x88] sm:$0xff]
                %136 = vst [vmem:[%s124 + $0x28] sm:$0xff] %v135
                %v137 = vld [vmem:[%s123 + $0xc0] sm:$0xff]
                %138 = vst [vmem:[%s124 + $0x30] sm:$0xff] %v137
                %v139 = vld [vmem:[%s123 + $0xc8] sm:$0xff]
                %140 = vst [vmem:[%s124 + $0x38] sm:$0xff] %v139
                %v141 = vld [vmem:[%s123 + $0x100] sm:$0xff]
                %142 = vst [vmem:[%s124 + $0x40] sm:$0xff] %v141
                %v143 = vld [vmem:[%s123 + $0x108] sm:$0xff]
                %144 = vst [vmem:[%s124 + $0x48] sm:$0xff] %v143
                %v145 = vld [vmem:[%s123 + $0x140] sm:$0xff]
                %146 = vst [vmem:[%s124 + $0x50] sm:$0xff] %v145
                %v147 = vld [vmem:[%s123 + $0x148] sm:$0xff]
                %148 = vst [vmem:[%s124 + $0x58] sm:$0xff] %v147
                %v149 = vld [vmem:[%s123 + $0x180] sm:$0xff]
                %150 = vst [vmem:[%s124 + $0x60] sm:$0xff] %v149
                %v151 = vld [vmem:[%s123 + $0x188] sm:$0xff]
                %152 = vst [vmem:[%s124 + $0x68] sm:$0xff] %v151
                %v153 = vld [vmem:[%s123 + $0x1c0] sm:$0xff]
                %154 = vst [vmem:[%s124 + $0x70] sm:$0xff] %v153
                %v155 = vld [vmem:[%s123 + $0x1c8] sm:$0xff]
                %156 = vst [vmem:[%s124 + $0x78] sm:$0xff] %v155
              $region37: #{discriminator_forward.5} parent=31 // loop_footer
                %s122 = sadd.s32 1, %s118
              $region38: #{discriminator_forward.5} parent=31 // loop_footer_branch
                %117 = sbr.rel target = $region34
              $region39: #{discriminator_forward.5} parent=31 // loop_exit
                _
            $region32: #{discriminator_forward.5} parent=27 // pred_fallthru
              _
            // Predicated region
            $region40: #{discriminator_forward.5} parent=27 // pred_check
              _
            $region41: #{discriminator_forward.5} parent=27 // pred_check_branch
              %158 = sbr.rel target = $region43
            $region42: #{discriminator_forward.5} parent=27 // pred_region
              _
            $region43: #{discriminator_forward.5} parent=27 // pred_fallthru
              _
          $region28: #{discriminator_forward.5} parent=23 // pred_fallthru
            _
          %159 = vnop
        $region24: #{discriminator_forward.5} parent=19 // pred_fallthru
          _
      $region20: #{discriminator_forward.5} parent=5 // pred_fallthru
        _
      %p160 = scmp.le.s32.totalorder 1, %s8
      %p161 = scmp.lt.s32.totalorder %s8, 5
      %p162 = pnand %p160, %p161
      %p163 = pneg %p162
      // Predicated region
      $region44: #{discriminator_forward.5} parent=5 // pred_check
        _
      $region45: #{discriminator_forward.5} parent=5 // pred_check_branch
        %165 = sbr.rel (%p162) target = $region47
      $region46: #{discriminator_forward.5} parent=5 // pred_region
        %s166 = ssub.s32 %s8, 1
        %s167 = sand.u32 %s42, 1
        %s168 = sand.u32 %s42, 1
        %s169 = smul.addr %s168, 128
        %s170 = scalar_lea.vmem [#allocation2], %s169
        // Predicated region
        $region48: #{discriminator_forward.5} parent=46 // pred_check
          %p171 = pneg %p55
        $region49: #{discriminator_forward.5} parent=46 // pred_check_branch
          %173 = sbr.rel (%p171) target = $region51
        $region50: #{discriminator_forward.5} parent=46 // pred_region
          _
        $region51: #{discriminator_forward.5} parent=46 // pred_fallthru
          _
        %p174 = pneg %p29
        %p175 = pneg %p26
        %s176 = sand.u32 %s42, 1
        %s177 = sand.u32 %s42, 1
        %s178 = smul.addr %s177, 128
        %s179 = scalar_lea.vmem [#allocation2], %s178
        %p180 = pneg %p55
        %p181 = pneg %p52
        %p182 = pneg %p81
        %p183 = pneg %p78
        %s184 = smul.u32 4, %s13
        %p185 = scmp.lt.s32.totalorder %s184, 15
        %s186 = scalar_select %p185, %s184, 15
        %s187 = smul.addr %s186, 4
        %s188 = scalar_lea.vmem %s2, %s187
        %s189 = smul.u32 4, %s13
        %s190 = smul.u32 4, %s13
        %p191 = scmp.lt.s32.totalorder %s190, 15
        %s192 = scalar_select %p191, %s190, 15
        %s193 = smul.addr %s192, 4
        %s194 = scalar_lea.vmem %s2, %s193
        %s195 = smul.u32 4, %s13
        %v197 = vld [vmem:[%s0] sm:$0xf]
        %v198 = vld [vmem:[%s170] sm:$0xff]
        %v199 = vld [vmem:[%s170 + $0x8] sm:$0xff]
        %v200 = vld [vmem:[%s170 + $0x10] sm:$0xff]
        %v201 = vld [vmem:[%s170 + $0x18] sm:$0xff]
        %v202 = vld [vmem:[%s170 + $0x20] sm:$0xff]
        %v203 = vld [vmem:[%s170 + $0x28] sm:$0xff]
        %v204 = vld [vmem:[%s170 + $0x30] sm:$0xff]
        %v205 = vld [vmem:[%s170 + $0x38] sm:$0xff]
        %v206 = vld [vmem:[%s170 + $0x40] sm:$0xff]
        %v207 = vld [vmem:[%s170 + $0x48] sm:$0xff]
        %v208 = vld [vmem:[%s170 + $0x50] sm:$0xff]
        %v209 = vld [vmem:[%s170 + $0x58] sm:$0xff]
        %v210 = vld [vmem:[%s170 + $0x60] sm:$0xff]
        %v211 = vld [vmem:[%s170 + $0x68] sm:$0xff]
        %v212 = vld [vmem:[%s170 + $0x70] sm:$0xff]
        %v213 = vld [vmem:[%s170 + $0x78] sm:$0xff]
        %v230 = vunpack.c.l.b16 %v198
        %v231 = vunpack.c.h.b16 %v198
        %v232 = vunpack.c.l.b16 %v199
        %v233 = vunpack.c.h.b16 %v199
        %v234 = vunpack.c.l.b16 %v200
        %v235 = vunpack.c.h.b16 %v200
        %v236 = vunpack.c.l.b16 %v201
        %v237 = vunpack.c.h.b16 %v201
        %v238 = vunpack.c.l.b16 %v202
        %v239 = vunpack.c.h.b16 %v202
        %v240 = vunpack.c.l.b16 %v203
        %v241 = vunpack.c.h.b16 %v203
        %v242 = vunpack.c.l.b16 %v204
        %v243 = vunpack.c.h.b16 %v204
        %v244 = vunpack.c.l.b16 %v205
        %v245 = vunpack.c.h.b16 %v205
        %v246 = vunpack.c.l.b16 %v206
        %v247 = vunpack.c.h.b16 %v206
        %v248 = vunpack.c.l.b16 %v207
        %v249 = vunpack.c.h.b16 %v207
        %v250 = vunpack.c.l.b16 %v208
        %v251 = vunpack.c.h.b16 %v208
        %v252 = vunpack.c.l.b16 %v209
        %v253 = vunpack.c.h.b16 %v209
        %v254 = vunpack.c.l.b16 %v210
        %v255 = vunpack.c.h.b16 %v210
        %v256 = vunpack.c.l.b16 %v211
        %v257 = vunpack.c.h.b16 %v211
        %v258 = vunpack.c.l.b16 %v212
        %v259 = vunpack.c.h.b16 %v212
        %v260 = vunpack.c.l.b16 %v213
        %v261 = vunpack.c.h.b16 %v213
        %v262 = vpack.c.b16 %v234, %v230
        %v263 = vpack.c.b16 %v235, %v231
        %v264 = vpack.c.b16 %v236, %v232
        %v265 = vpack.c.b16 %v237, %v233
        %v266 = vpack.c.b16 %v242, %v238
        %v267 = vpack.c.b16 %v243, %v239
        %v268 = vpack.c.b16 %v244, %v240
        %v269 = vpack.c.b16 %v245, %v241
        %v270 = vpack.c.b16 %v250, %v246
        %v271 = vpack.c.b16 %v251, %v247
        %v272 = vpack.c.b16 %v252, %v248
        %v273 = vpack.c.b16 %v253, %v249
        %v274 = vpack.c.b16 %v258, %v254
        %v275 = vpack.c.b16 %v259, %v255
        %v276 = vpack.c.b16 %v260, %v256
        %v277 = vpack.c.b16 %v261, %v257
        %vm294 = vcmask 523264
        %v296 = vsel %vm294, %v197, 0
        %298 = vmatprep.subr.bf16.mxu0 0
        %299 = vmatpush1.bf16.msra.mxu0 0
        %300 = vmatprep.subr.bf16.mxu0 0
        %301 = vmatpush1.bf16.msra.mxu0 0
        %302 = vmatprep.subr.bf16.mxu0 0
        %303 = vmatpush1.bf16.msra.mxu0 0
        %304 = vmatprep.subr.bf16.mxu0 0
        %305 = vmatpush1.bf16.msra.mxu0 0
        %306 = vmatprep.subr.bf16.mxu0 %v275
        %307 = vmatpush1.bf16.msra.mxu0 %v274
        %308 = vmatprep.subr.bf16.mxu0 %v271
        %309 = vmatpush1.bf16.msra.mxu0 %v270
        %310 = vmatprep.subr.bf16.mxu0 %v267
        %311 = vmatpush1.bf16.msra.mxu0 %v266
        %312 = vmatprep.subr.bf16.mxu0 %v263
        %313 = vmatpush1.bf16.msra.mxu0 %v262
        %314 = vmatprep.subr.bf16.mxu0 0
        %315 = vmatpush2.bf16.msra.mxu0 0
        %316 = vmatprep.subr.bf16.mxu0 0
        %317 = vmatpush2.bf16.msra.mxu0 0
        %318 = vmatprep.subr.bf16.mxu0 0
        %319 = vmatpush2.bf16.msra.mxu0 0
        %320 = vmatprep.subr.bf16.mxu0 0
        %321 = vmatpush2.bf16.msra.mxu0 0
        %322 = vmatprep.subr.bf16.mxu0 0
        %323 = vmatpush2.bf16.msra.mxu0 0
        %324 = vmatprep.subr.bf16.mxu0 0
        %325 = vmatpush2.bf16.msra.mxu0 0
        %326 = vmatprep.subr.bf16.mxu0 0
        %327 = vmatpush2.bf16.msra.mxu0 0
        %328 = vmatprep.subr.bf16.mxu0 0
        %329 = vmatpush2.bf16.msra.mxu0 0
        %330 = vmatprep.mubr.bf16.mxu0 0
        %331 = vmatmul.mubr.bf16.gmra.mxu0 %v296
        %v332 = vpop.f32.mrf.mxu0
        %v333 = vadd.f32 0.0, %v332
        %v334 = vpop.f32.mrf.mxu0
        %v335 = vadd.f32 0.0, %v334
        %v336 = vpop.f32.mrf.mxu0
        %v337 = vpop.f32.mrf.mxu0
        %338 = vdwg.mxu0
        %339 = vmatprep.subr.bf16.mxu0 0
        %340 = vmatpush1.bf16.msra.mxu0 0
        %341 = vmatprep.subr.bf16.mxu0 0
        %342 = vmatpush1.bf16.msra.mxu0 0
        %343 = vmatprep.subr.bf16.mxu0 0
        %344 = vmatpush1.bf16.msra.mxu0 0
        %345 = vmatprep.subr.bf16.mxu0 0
        %346 = vmatpush1.bf16.msra.mxu0 0
        %347 = vmatprep.subr.bf16.mxu0 %v277
        %348 = vmatpush1.bf16.msra.mxu0 %v276
        %349 = vmatprep.subr.bf16.mxu0 %v273
        %350 = vmatpush1.bf16.msra.mxu0 %v272
        %351 = vmatprep.subr.bf16.mxu0 %v269
        %352 = vmatpush1.bf16.msra.mxu0 %v268
        %353 = vmatprep.subr.bf16.mxu0 %v265
        %354 = vmatpush1.bf16.msra.mxu0 %v264
        %355 = vmatprep.subr.bf16.mxu0 0
        %356 = vmatpush2.bf16.msra.mxu0 0
        %357 = vmatprep.subr.bf16.mxu0 0
        %358 = vmatpush2.bf16.msra.mxu0 0
        %359 = vmatprep.subr.bf16.mxu0 0
        %360 = vmatpush2.bf16.msra.mxu0 0
        %361 = vmatprep.subr.bf16.mxu0 0
        %362 = vmatpush2.bf16.msra.mxu0 0
        %363 = vmatprep.subr.bf16.mxu0 0
        %364 = vmatpush2.bf16.msra.mxu0 0
        %365 = vmatprep.subr.bf16.mxu0 0
        %366 = vmatpush2.bf16.msra.mxu0 0
        %367 = vmatprep.subr.bf16.mxu0 0
        %368 = vmatpush2.bf16.msra.mxu0 0
        %369 = vmatprep.subr.bf16.mxu0 0
        %370 = vmatpush2.bf16.msra.mxu0 0
        %371 = vmatprep.mubr.bf16.mxu0 0
        %372 = vmatmul.mubr.bf16.gmra.mxu0 %v296
        %v373 = vpop.f32.mrf.mxu0
        %v374 = vadd.f32 0.0, %v373
        %v375 = vpop.f32.mrf.mxu0
        %v376 = vadd.f32 0.0, %v375
        %v377 = vpop.f32.mrf.mxu0
        %v378 = vpop.f32.mrf.mxu0
        %379 = vdwg.mxu0
        %v380 = vmul.f32 %v333, 0.2
        %v381 = vmul.f32 %v335, 0.2
        %v382 = vmul.f32 %v374, 0.2
        %v383 = vmul.f32 %v376, 0.2
        %v384 = vmax.f32 %v333, %v380
        %v385 = vmax.f32 %v335, %v381
        %v386 = vmax.f32 %v374, %v382
        %v387 = vmax.f32 %v376, %v383
        %v388 = vpack.c.bf16 %v384, %v384
        %v389 = vpack.c.bf16 %v385, %v385
        %v390 = vpack.c.bf16 %v386, %v386
        %v391 = vpack.c.bf16 %v387, %v387
        %v396 = vunpack.c.l.b16 %v388
        %v397 = vunpack.c.l.b16 %v389
        %v398 = vunpack.c.l.b16 %v390
        %v399 = vunpack.c.l.b16 %v391
        %v400 = vpack.c.b16 %v397, %v396
        %v401 = vpack.c.b16 %v399, %v398
        %404 = vst [vmem:[%s194] sm:$0xff] %v400
        %405 = vst [vmem:[%s194 + $0x8] sm:$0xff] %v401
        %s406 = smul.u32 4, %s13
        %p407 = scmp.lt.s32.totalorder %s406, 15
        %s408 = scalar_select %p407, %s406, 15
        %s409 = smul.addr %s408, 4
        %s410 = scalar_lea.vmem %s2, %s409
        // Predicated region
        $region52: #{discriminator_forward.5} parent=46 // pred_check
          %p411 = pneg %p78
        $region53: #{discriminator_forward.5} parent=46 // pred_check_branch
          %413 = sbr.rel (%p411) target = $region55
        $region54: #{discriminator_forward.5} parent=46 // pred_region
          %s414 = smul.u32 4, %s13
        $region55: #{discriminator_forward.5} parent=46 // pred_fallthru
          _
      $region47: #{discriminator_forward.5} parent=5 // pred_fallthru
        _
      %p415 = scmp.le.s32.totalorder 2, %s8
      // Predicated region
      $region56: #{discriminator_forward.5} parent=5 // pred_check
        %p416 = pneg %p415
      $region57: #{discriminator_forward.5} parent=5 // pred_check_branch
        %418 = sbr.rel (%p416) target = $region59
      $region58: #{discriminator_forward.5} parent=5 // pred_region
        %s419 = ssub.s32 %s8, 2
        // Predicated region
        $region60: #{discriminator_forward.5} parent=58 // pred_check
          %p420 = pneg %p84
        $region61: #{discriminator_forward.5} parent=58 // pred_check_branch
          %422 = sbr.rel (%p420) target = $region63
        $region62: #{discriminator_forward.5} parent=58 // pred_region
          %s423 = smul.u32 4, %s14
          %p424 = scmp.lt.s32.totalorder %s423, 15
          %s425 = scalar_select %p424, %s423, 15
          %s426 = smul.addr %s425, 4
          %s427 = scalar_lea.vmem %s2, %s426
        $region63: #{discriminator_forward.5} parent=58 // pred_fallthru
          _
      $region59: #{discriminator_forward.5} parent=5 // pred_fallthru
        _
    $region6: #{discriminator_forward.5} parent=1 // loop_footer
      %s12 = sadd.s32 1, %s8
    $region7: #{discriminator_forward.5} parent=1 // loop_footer_branch
      %7 = sbr.rel target = $region3
    $region8: #{discriminator_forward.5} parent=1 // loop_exit
      _

// kernel: discriminator_forward.6
$region0: #{discriminator_forward.6}
  #allocation0 [shape = 'u32[]', space=smem, size = 0x4, offset = 0x4, fixed_abs, tag = 'smem constant byte address 0x4 - core index']
  #allocation1 [shape = 'u32[144,128]{1,0:T(1,128)}', space=vmem, size = 0x12000, scoped, tag = 'internal scratch']
  %s0 = inlined_call_operand.vmem [shape: bf16[16,128], index: 0, kind: input, shape index: {}]
  %s1 = inlined_call_operand.vmem [shape: bf16[128,512], index: 1, kind: input, shape index: {}]
  %s2 = inlined_call_operand.vmem [shape: f32[16,1], index: 2, kind: input, shape index: {}]
  %s3 = inlined_call_operand.vmem [shape: f32[16,1], index: 3, kind: input, shape index: {}]
  %s4 = inlined_call_operand.vmem [shape: bf16[16,512], index: 4, kind: output, shape index: {}]
  %s5 = sld [smem:[#allocation0]]
  $region26: #{discriminator_forward.6} parent=0
    _
  %s7 = ssub.s32 1, %s5
  %s8 = scalar_select 0, %s7, %s5
  // Predicated region
  $region2: #{discriminator_forward.6} parent=0 // pred_check
    _
  $region3: #{discriminator_forward.6} parent=0 // pred_check_branch
    %10 = sbr.rel (0) target = $region5
  $region4: #{discriminator_forward.6} parent=0 // pred_region
    _
  $region5: #{discriminator_forward.6} parent=0 // pred_fallthru
    _
  // Predicated region
  $region6: #{discriminator_forward.6} parent=0 // pred_check
    _
  $region7: #{discriminator_forward.6} parent=0 // pred_check_branch
    %12 = sbr.rel (0) target = $region9
  $region8: #{discriminator_forward.6} parent=0 // pred_region
    _
  $region9: #{discriminator_forward.6} parent=0 // pred_fallthru
    _
  // Predicated region
  $region10: #{discriminator_forward.6} parent=0 // pred_check
    _
  $region11: #{discriminator_forward.6} parent=0 // pred_check_branch
    %14 = sbr.rel (0) target = $region13
  $region12: #{discriminator_forward.6} parent=0 // pred_region
    _
  $region13: #{discriminator_forward.6} parent=0 // pred_fallthru
    _
  // Predicated region
  $region14: #{discriminator_forward.6} parent=0 // pred_check
    _
  $region15: #{discriminator_forward.6} parent=0 // pred_check_branch
    %16 = sbr.rel (0) target = $region17
  $region16: #{discriminator_forward.6} parent=0 // pred_region
    _
  $region17: #{discriminator_forward.6} parent=0 // pred_fallthru
    _
  %v18 = vld [vmem:[%s0] sm:$0xf]
  %v19 = vld [vmem:[%s0 + $0x4] sm:$0xf]
  %v20 = vld [vmem:[%s1] sm:$0xff]
  %v21 = vld [vmem:[%s1 + $0x8] sm:$0xff]
  %v22 = vld [vmem:[%s1 + $0x10] sm:$0xff]
  %v23 = vld [vmem:[%s1 + $0x18] sm:$0xff]
  %v24 = vld [vmem:[%s1 + $0x20] sm:$0xff]
  %v25 = vld [vmem:[%s1 + $0x28] sm:$0xff]
  %v26 = vld [vmem:[%s1 + $0x30] sm:$0xff]
  %v27 = vld [vmem:[%s1 + $0x38] sm:$0xff]
  %v28 = vld [vmem:[%s1 + $0x40] sm:$0xff]
  %v29 = vld [vmem:[%s1 + $0x48] sm:$0xff]
  %v30 = vld [vmem:[%s1 + $0x50] sm:$0xff]
  %v31 = vld [vmem:[%s1 + $0x58] sm:$0xff]
  %v32 = vld [vmem:[%s1 + $0x60] sm:$0xff]
  %v33 = vld [vmem:[%s1 + $0x68] sm:$0xff]
  %v34 = vld [vmem:[%s1 + $0x70] sm:$0xff]
  %v35 = vld [vmem:[%s1 + $0x78] sm:$0xff]
  %v36 = vld [vmem:[%s1 + $0x80] sm:$0xff]
  %v37 = vld [vmem:[%s1 + $0x88] sm:$0xff]
  %v38 = vld [vmem:[%s1 + $0x90] sm:$0xff]
  %v39 = vld [vmem:[%s1 + $0x98] sm:$0xff]
  %v40 = vld [vmem:[%s1 + $0xa0] sm:$0xff]
  %v41 = vld [vmem:[%s1 + $0xa8] sm:$0xff]
  %v42 = vld [vmem:[%s1 + $0xb0] sm:$0xff]
  %v43 = vld [vmem:[%s1 + $0xb8] sm:$0xff]
  %v44 = vld [vmem:[%s1 + $0xc0] sm:$0xff]
  %v45 = vld [vmem:[%s1 + $0xc8] sm:$0xff]
  %v46 = vld [vmem:[%s1 + $0xd0] sm:$0xff]
  %v47 = vld [vmem:[%s1 + $0xd8] sm:$0xff]
  %v48 = vld [vmem:[%s1 + $0xe0] sm:$0xff]
  %v49 = vld [vmem:[%s1 + $0xe8] sm:$0xff]
  %v50 = vld [vmem:[%s1 + $0xf0] sm:$0xff]
  %v51 = vld [vmem:[%s1 + $0xf8] sm:$0xff]
  %v54 = vunpack.c.l.b16 %v18
  %v55 = vunpack.c.l.b16 %v19
  %v56 = vpack.c.b16 %v55, %v54
  %v90 = vunpack.c.l.b16 %v20
  %v91 = vunpack.c.h.b16 %v20
  %v92 = vunpack.c.l.b16 %v21
  %v93 = vunpack.c.h.b16 %v21
  %v94 = vunpack.c.l.b16 %v22
  %v95 = vunpack.c.h.b16 %v22
  %v96 = vunpack.c.l.b16 %v23
  %v97 = vunpack.c.h.b16 %v23
  %v98 = vunpack.c.l.b16 %v24
  %v99 = vunpack.c.h.b16 %v24
  %v100 = vunpack.c.l.b16 %v25
  %v101 = vunpack.c.h.b16 %v25
  %v102 = vunpack.c.l.b16 %v26
  %v103 = vunpack.c.h.b16 %v26
  %v104 = vunpack.c.l.b16 %v27
  %v105 = vunpack.c.h.b16 %v27
  %v106 = vunpack.c.l.b16 %v28
  %v107 = vunpack.c.h.b16 %v28
  %v108 = vunpack.c.l.b16 %v29
  %v109 = vunpack.c.h.b16 %v29
  %v110 = vunpack.c.l.b16 %v30
  %v111 = vunpack.c.h.b16 %v30
  %v112 = vunpack.c.l.b16 %v31
  %v113 = vunpack.c.h.b16 %v31
  %v114 = vunpack.c.l.b16 %v32
  %v115 = vunpack.c.h.b16 %v32
  %v116 = vunpack.c.l.b16 %v33
  %v117 = vunpack.c.h.b16 %v33
  %v118 = vunpack.c.l.b16 %v34
  %v119 = vunpack.c.h.b16 %v34
  %v120 = vunpack.c.l.b16 %v35
  %v121 = vunpack.c.h.b16 %v35
  %v122 = vunpack.c.l.b16 %v36
  %v123 = vunpack.c.h.b16 %v36
  %v124 = vunpack.c.l.b16 %v37
  %v125 = vunpack.c.h.b16 %v37
  %v126 = vunpack.c.l.b16 %v38
  %v127 = vunpack.c.h.b16 %v38
  %v128 = vunpack.c.l.b16 %v39
  %v129 = vunpack.c.h.b16 %v39
  %v130 = vunpack.c.l.b16 %v40
  %v131 = vunpack.c.h.b16 %v40
  %v132 = vunpack.c.l.b16 %v41
  %v133 = vunpack.c.h.b16 %v41
  %v134 = vunpack.c.l.b16 %v42
  %v135 = vunpack.c.h.b16 %v42
  %v136 = vunpack.c.l.b16 %v43
  %v137 = vunpack.c.h.b16 %v43
  %v138 = vunpack.c.l.b16 %v44
  %v139 = vunpack.c.h.b16 %v44
  %v140 = vunpack.c.l.b16 %v45
  %v141 = vunpack.c.h.b16 %v45
  %v142 = vunpack.c.l.b16 %v46
  %v143 = vunpack.c.h.b16 %v46
  %v144 = vunpack.c.l.b16 %v47
  %v145 = vunpack.c.h.b16 %v47
  %v146 = vunpack.c.l.b16 %v48
  %v147 = vunpack.c.h.b16 %v48
  %v148 = vunpack.c.l.b16 %v49
  %v149 = vunpack.c.h.b16 %v49
  %v150 = vunpack.c.l.b16 %v50
  %v151 = vunpack.c.h.b16 %v50
  %v152 = vunpack.c.l.b16 %v51
  %v153 = vunpack.c.h.b16 %v51
  %v154 = vpack.c.b16 %v94, %v90
  %v155 = vpack.c.b16 %v95, %v91
  %v156 = vpack.c.b16 %v96, %v92
  %v157 = vpack.c.b16 %v97, %v93
  %v158 = vpack.c.b16 %v102, %v98
  %v159 = vpack.c.b16 %v103, %v99
  %v160 = vpack.c.b16 %v104, %v100
  %v161 = vpack.c.b16 %v105, %v101
  %v162 = vpack.c.b16 %v110, %v106
  %v163 = vpack.c.b16 %v111, %v107
  %v164 = vpack.c.b16 %v112, %v108
  %v165 = vpack.c.b16 %v113, %v109
  %v166 = vpack.c.b16 %v118, %v114
  %v167 = vpack.c.b16 %v119, %v115
  %v168 = vpack.c.b16 %v120, %v116
  %v169 = vpack.c.b16 %v121, %v117
  %v170 = vpack.c.b16 %v126, %v122
  %v171 = vpack.c.b16 %v127, %v123
  %v172 = vpack.c.b16 %v128, %v124
  %v173 = vpack.c.b16 %v129, %v125
  %v174 = vpack.c.b16 %v134, %v130
  %v175 = vpack.c.b16 %v135, %v131
  %v176 = vpack.c.b16 %v136, %v132
  %v177 = vpack.c.b16 %v137, %v133
  %v178 = vpack.c.b16 %v142, %v138
  %v179 = vpack.c.b16 %v143, %v139
  %v180 = vpack.c.b16 %v144, %v140
  %v181 = vpack.c.b16 %v145, %v141
  %v182 = vpack.c.b16 %v150, %v146
  %v183 = vpack.c.b16 %v151, %v147
  %v184 = vpack.c.b16 %v152, %v148
  %v185 = vpack.c.b16 %v153, %v149
  %218 = vmatprep.subr.bf16.mxu0 %v183
  %219 = vmatpush1.bf16.msra.mxu0 %v182
  %220 = vmatprep.subr.bf16.mxu0 %v179
  %221 = vmatpush1.bf16.msra.mxu0 %v178
  %222 = vmatprep.subr.bf16.mxu0 %v175
  %223 = vmatpush1.bf16.msra.mxu0 %v174
  %224 = vmatprep.subr.bf16.mxu0 %v171
  %225 = vmatpush1.bf16.msra.mxu0 %v170
  %226 = vmatprep.subr.bf16.mxu0 %v167
  %227 = vmatpush1.bf16.msra.mxu0 %v166
  %228 = vmatprep.subr.bf16.mxu0 %v163
  %229 = vmatpush1.bf16.msra.mxu0 %v162
  %230 = vmatprep.subr.bf16.mxu0 %v159
  %231 = vmatpush1.bf16.msra.mxu0 %v158
  %232 = vmatprep.subr.bf16.mxu0 %v155
  %233 = vmatpush1.bf16.msra.mxu0 %v154
  %234 = vmatprep.subr.bf16.mxu0 0
  %235 = vmatpush2.bf16.msra.mxu0 0
  %236 = vmatprep.subr.bf16.mxu0 0
  %237 = vmatpush2.bf16.msra.mxu0 0
  %238 = vmatprep.subr.bf16.mxu0 0
  %239 = vmatpush2.bf16.msra.mxu0 0
  %240 = vmatprep.subr.bf16.mxu0 0
  %241 = vmatpush2.bf16.msra.mxu0 0
  %242 = vmatprep.subr.bf16.mxu0 0
  %243 = vmatpush2.bf16.msra.mxu0 0
  %244 = vmatprep.subr.bf16.mxu0 0
  %245 = vmatpush2.bf16.msra.mxu0 0
  %246 = vmatprep.subr.bf16.mxu0 0
  %247 = vmatpush2.bf16.msra.mxu0 0
  %248 = vmatprep.subr.bf16.mxu0 0
  %249 = vmatpush2.bf16.msra.mxu0 0
  %250 = vmatprep.mubr.bf16.mxu0 0
  %251 = vmatmul.mubr.bf16.gmra.mxu0 %v56
  %v252 = vpop.f32.mrf.mxu0
  %v253 = vadd.f32 0.0, %v252
  %v254 = vpop.f32.mrf.mxu0
  %v255 = vadd.f32 0.0, %v254
  %v256 = vpop.f32.mrf.mxu0
  %v257 = vadd.f32 0.0, %v256
  %v258 = vpop.f32.mrf.mxu0
  %v259 = vadd.f32 0.0, %v258
  %260 = vdwg.mxu0
  %261 = vmatprep.subr.bf16.mxu0 %v185
  %262 = vmatpush1.bf16.msra.mxu0 %v184
  %263 = vmatprep.subr.bf16.mxu0 %v181
  %264 = vmatpush1.bf16.msra.mxu0 %v180
  %265 = vmatprep.subr.bf16.mxu0 %v177
  %266 = vmatpush1.bf16.msra.mxu0 %v176
  %267 = vmatprep.subr.bf16.mxu0 %v173
  %268 = vmatpush1.bf16.msra.mxu0 %v172
  %269 = vmatprep.subr.bf16.mxu0 %v169
  %270 = vmatpush1.bf16.msra.mxu0 %v168
  %271 = vmatprep.subr.bf16.mxu0 %v165
  %272 = vmatpush1.bf16.msra.mxu0 %v164
  %273 = vmatprep.subr.bf16.mxu0 %v161
  %274 = vmatpush1.bf16.msra.mxu0 %v160
  %275 = vmatprep.subr.bf16.mxu0 %v157
  %276 = vmatpush1.bf16.msra.mxu0 %v156
  %277 = vmatprep.subr.bf16.mxu0 0
  %278 = vmatpush2.bf16.msra.mxu0 0
  %279 = vmatprep.subr.bf16.mxu0 0
  %280 = vmatpush2.bf16.msra.mxu0 0
  %281 = vmatprep.subr.bf16.mxu0 0
  %282 = vmatpush2.bf16.msra.mxu0 0
  %283 = vmatprep.subr.bf16.mxu0 0
  %284 = vmatpush2.bf16.msra.mxu0 0
  %285 = vmatprep.subr.bf16.mxu0 0
  %286 = vmatpush2.bf16.msra.mxu0 0
  %287 = vmatprep.subr.bf16.mxu0 0
  %288 = vmatpush2.bf16.msra.mxu0 0
  %289 = vmatprep.subr.bf16.mxu0 0
  %290 = vmatpush2.bf16.msra.mxu0 0
  %291 = vmatprep.subr.bf16.mxu0 0
  %292 = vmatpush2.bf16.msra.mxu0 0
  %293 = vmatprep.mubr.bf16.mxu0 0
  %294 = vmatmul.mubr.bf16.gmra.mxu0 %v56
  %v295 = vpop.f32.mrf.mxu0
  %v296 = vadd.f32 0.0, %v295
  %v297 = vpop.f32.mrf.mxu0
  %v298 = vadd.f32 0.0, %v297
  %v299 = vpop.f32.mrf.mxu0
  %v300 = vadd.f32 0.0, %v299
  %v301 = vpop.f32.mrf.mxu0
  %v302 = vadd.f32 0.0, %v301
  %303 = vdwg.mxu0
  %v304 = vadd.f32 %v253, %v255
  %v305 = vadd.f32 %v304, %v296
  %v306 = vadd.f32 %v305, %v298
  %307 = vadd.xlane.f32.xlu0 %v306
  %v308 = vpop.xlane.xlu0 %307
  %v309 = vadd.f32 %v257, %v259
  %v310 = vadd.f32 %v309, %v300
  %v311 = vadd.f32 %v310, %v302
  %312 = vadd.xlane.f32.xlu0 %v311
  %v313 = vpop.xlane.xlu0 %312
  %v314 = vrcp.pop 512.0
  %v315 = vmul.f32 %v308, %v314
  %v316 = vmul.f32 %v313, %v314
  %v317 = vsub.f32 %v253, %v315
  %v318 = vsub.f32 %v255, %v315
  %v319 = vsub.f32 %v296, %v315
  %v320 = vsub.f32 %v298, %v315
  %v321 = vsub.f32 %v257, %v316
  %v322 = vsub.f32 %v259, %v316
  %v323 = vsub.f32 %v300, %v316
  %v324 = vsub.f32 %v302, %v316
  %v325 = vmul.f32 %v317, %v317
  %v326 = vmul.f32 %v318, %v318
  %v327 = vmul.f32 %v319, %v319
  %v328 = vmul.f32 %v320, %v320
  %v329 = vmul.f32 %v321, %v321
  %v330 = vmul.f32 %v322, %v322
  %v331 = vmul.f32 %v323, %v323
  %v332 = vmul.f32 %v324, %v324
  %v333 = vadd.f32 %v325, %v326
  %v334 = vadd.f32 %v333, %v327
  %v335 = vadd.f32 %v334, %v328
  %336 = vadd.xlane.f32.xlu0 %v335
  %v337 = vpop.xlane.xlu0 %336
  %v338 = vadd.f32 %v329, %v330
  %v339 = vadd.f32 %v338, %v331
  %v340 = vadd.f32 %v339, %v332
  %341 = vadd.xlane.f32.xlu0 %v340
  %v342 = vpop.xlane.xlu0 %341
  %v343 = vmul.f32 %v337, %v314
  %v344 = vmul.f32 %v342, %v314
  %v345 = vadd.f32 %v343, 1e-05
  %v346 = vadd.f32 %v344, 1e-05
  %v347 = vrsqrt.pop %v345
  %v348 = vrsqrt.pop %v346
  %v349 = vmul.f32 %v317, %v347
  %v350 = vmul.f32 %v318, %v347
  %v351 = vmul.f32 %v319, %v347
  %v352 = vmul.f32 %v320, %v347
  %v353 = vmul.f32 %v321, %v348
  %v354 = vmul.f32 %v322, %v348
  %v355 = vmul.f32 %v323, %v348
  %v356 = vmul.f32 %v324, %v348
  %v357 = vld [vmem:[%s2] sm:$0xff]
  %v358 = vld [vmem:[%s2 + $0x8] sm:$0xff]
  %360 = vset.pattern.permute.xlu0 0
  %361 = vperm.xlu0 %360, %v357
  %v362 = vpop.permute.xlu0 %361
  %365 = vset.pattern.permute.xlu0 0
  %366 = vperm.xlu0 %365, %v358
  %v367 = vpop.permute.xlu0 %366
  %v369 = vmul.f32 %v349, %v362
  %v370 = vmul.f32 %v350, %v362
  %v371 = vmul.f32 %v351, %v362
  %v372 = vmul.f32 %v352, %v362
  %v373 = vmul.f32 %v353, %v367
  %v374 = vmul.f32 %v354, %v367
  %v375 = vmul.f32 %v355, %v367
  %v376 = vmul.f32 %v356, %v367
  %v377 = vld [vmem:[%s3] sm:$0xff]
  %v378 = vld [vmem:[%s3 + $0x8] sm:$0xff]
  %380 = vset.pattern.permute.xlu0 0
  %381 = vperm.xlu0 %380, %v377
  %v382 = vpop.permute.xlu0 %381
  %385 = vset.pattern.permute.xlu0 0
  %386 = vperm.xlu0 %385, %v378
  %v387 = vpop.permute.xlu0 %386
  %v389 = vadd.f32 %v369, %v382
  %v390 = vadd.f32 %v370, %v382
  %v391 = vadd.f32 %v371, %v382
  %v392 = vadd.f32 %v372, %v382
  %v393 = vadd.f32 %v373, %v387
  %v394 = vadd.f32 %v374, %v387
  %v395 = vadd.f32 %v375, %v387
  %v396 = vadd.f32 %v376, %v387
  %v397 = vmul.f32 %v389, 0.2
  %v398 = vmul.f32 %v390, 0.2
  %v399 = vmul.f32 %v391, 0.2
  %v400 = vmul.f32 %v392, 0.2
  %v401 = vmul.f32 %v393, 0.2
  %v402 = vmul.f32 %v394, 0.2
  %v403 = vmul.f32 %v395, 0.2
  %v404 = vmul.f32 %v396, 0.2
  %v405 = vmax.f32 %v389, %v397
  %v406 = vmax.f32 %v390, %v398
  %v407 = vmax.f32 %v391, %v399
  %v408 = vmax.f32 %v392, %v400
  %v409 = vmax.f32 %v393, %v401
  %v410 = vmax.f32 %v394, %v402
  %v411 = vmax.f32 %v395, %v403
  %v412 = vmax.f32 %v396, %v404
  %v413 = vpack.c.bf16 %v409, %v405
  %v414 = vpack.c.bf16 %v410, %v406
  %v415 = vpack.c.bf16 %v411, %v407
  %v416 = vpack.c.bf16 %v412, %v408
  %v421 = vunpack.c.l.b16 %v413
  %v422 = vunpack.c.l.b16 %v414
  %v423 = vunpack.c.l.b16 %v415
  %v424 = vunpack.c.l.b16 %v416
  %v425 = vunpack.c.h.b16 %v413
  %v426 = vunpack.c.h.b16 %v414
  %v427 = vunpack.c.h.b16 %v415
  %v428 = vunpack.c.h.b16 %v416
  %v429 = vpack.c.b16 %v422, %v421
  %v430 = vpack.c.b16 %v424, %v423
  %v431 = vpack.c.b16 %v426, %v425
  %v432 = vpack.c.b16 %v428, %v427
  %437 = vst [vmem:[%s4] sm:$0xff] %v429
  %438 = vst [vmem:[%s4 + $0x8] sm:$0xff] %v430
  %439 = vst [vmem:[%s4 + $0x10] sm:$0xff] %v431
  %440 = vst [vmem:[%s4 + $0x18] sm:$0xff] %v432
  // Predicated region
  $region18: #{discriminator_forward.6} parent=0 // pred_check
    _
  $region19: #{discriminator_forward.6} parent=0 // pred_check_branch
    %442 = sbr.rel (0) target = $region21
  $region20: #{discriminator_forward.6} parent=0 // pred_region
    _
  $region21: #{discriminator_forward.6} parent=0 // pred_fallthru
    _
  // Predicated region
  $region22: #{discriminator_forward.6} parent=0 // pred_check
    _
  $region23: #{discriminator_forward.6} parent=0 // pred_check_branch
    %444 = sbr.rel (0) target = $region25
  $region24: #{discriminator_forward.6} parent=0 // pred_region
    _
  $region25: #{discriminator_forward.6} parent=0 // pred_fallthru
    _

// kernel: discriminator_forward.7
$region0: #{discriminator_forward.7}
  #allocation0 [shape = 'u32[]', space=smem, size = 0x4, offset = 0x4, fixed_abs, tag = 'smem constant byte address 0x4 - core index']
  #allocation1 [shape = 'u32[144,128]{1,0:T(1,128)}', space=vmem, size = 0x12000, scoped, tag = 'internal scratch']
  %s0 = inlined_call_operand.vmem [shape: bf16[32,256], index: 0, kind: input, shape index: {}]
  %s1 = inlined_call_operand.vmem [shape: bf16[256,128], index: 1, kind: input, shape index: {}]
  %s2 = inlined_call_operand.vmem [shape: f32[32,1], index: 2, kind: input, shape index: {}]
  %s3 = inlined_call_operand.vmem [shape: f32[32,1], index: 3, kind: input, shape index: {}]
  %s4 = inlined_call_operand.vmem [shape: bf16[32,128], index: 4, kind: output, shape index: {}]
  %s5 = sld [smem:[#allocation0]]
  $region26: #{discriminator_forward.7} parent=0
    _
  %s7 = ssub.s32 1, %s5
  %s8 = scalar_select 0, %s7, %s5
  // Predicated region
  $region2: #{discriminator_forward.7} parent=0 // pred_check
    _
  $region3: #{discriminator_forward.7} parent=0 // pred_check_branch
    %10 = sbr.rel (0) target = $region5
  $region4: #{discriminator_forward.7} parent=0 // pred_region
    _
  $region5: #{discriminator_forward.7} parent=0 // pred_fallthru
    _
  // Predicated region
  $region6: #{discriminator_forward.7} parent=0 // pred_check
    _
  $region7: #{discriminator_forward.7} parent=0 // pred_check_branch
    %12 = sbr.rel (0) target = $region9
  $region8: #{discriminator_forward.7} parent=0 // pred_region
    _
  $region9: #{discriminator_forward.7} parent=0 // pred_fallthru
    _
  // Predicated region
  $region10: #{discriminator_forward.7} parent=0 // pred_check
    _
  $region11: #{discriminator_forward.7} parent=0 // pred_check_branch
    %14 = sbr.rel (0) target = $region13
  $region12: #{discriminator_forward.7} parent=0 // pred_region
    _
  $region13: #{discriminator_forward.7} parent=0 // pred_fallthru
    _
  // Predicated region
  $region14: #{discriminator_forward.7} parent=0 // pred_check
    _
  $region15: #{discriminator_forward.7} parent=0 // pred_check_branch
    %16 = sbr.rel (0) target = $region17
  $region16: #{discriminator_forward.7} parent=0 // pred_region
    _
  $region17: #{discriminator_forward.7} parent=0 // pred_fallthru
    _
  %v18 = vld [vmem:[%s0] sm:$0xff]
  %v19 = vld [vmem:[%s0 + $0x8] sm:$0xff]
  %v20 = vld [vmem:[%s0 + $0x10] sm:$0xff]
  %v21 = vld [vmem:[%s0 + $0x18] sm:$0xff]
  %v22 = vld [vmem:[%s1] sm:$0xf]
  %v23 = vld [vmem:[%s1 + $0x4] sm:$0xf]
  %v24 = vld [vmem:[%s1 + $0x8] sm:$0xf]
  %v25 = vld [vmem:[%s1 + $0xc] sm:$0xf]
  %v26 = vld [vmem:[%s1 + $0x10] sm:$0xf]
  %v27 = vld [vmem:[%s1 + $0x14] sm:$0xf]
  %v28 = vld [vmem:[%s1 + $0x18] sm:$0xf]
  %v29 = vld [vmem:[%s1 + $0x1c] sm:$0xf]
  %v30 = vld [vmem:[%s1 + $0x20] sm:$0xf]
  %v31 = vld [vmem:[%s1 + $0x24] sm:$0xf]
  %v32 = vld [vmem:[%s1 + $0x28] sm:$0xf]
  %v33 = vld [vmem:[%s1 + $0x2c] sm:$0xf]
  %v34 = vld [vmem:[%s1 + $0x30] sm:$0xf]
  %v35 = vld [vmem:[%s1 + $0x34] sm:$0xf]
  %v36 = vld [vmem:[%s1 + $0x38] sm:$0xf]
  %v37 = vld [vmem:[%s1 + $0x3c] sm:$0xf]
  %v38 = vld [vmem:[%s1 + $0x40] sm:$0xf]
  %v39 = vld [vmem:[%s1 + $0x44] sm:$0xf]
  %v40 = vld [vmem:[%s1 + $0x48] sm:$0xf]
  %v41 = vld [vmem:[%s1 + $0x4c] sm:$0xf]
  %v42 = vld [vmem:[%s1 + $0x50] sm:$0xf]
  %v43 = vld [vmem:[%s1 + $0x54] sm:$0xf]
  %v44 = vld [vmem:[%s1 + $0x58] sm:$0xf]
  %v45 = vld [vmem:[%s1 + $0x5c] sm:$0xf]
  %v46 = vld [vmem:[%s1 + $0x60] sm:$0xf]
  %v47 = vld [vmem:[%s1 + $0x64] sm:$0xf]
  %v48 = vld [vmem:[%s1 + $0x68] sm:$0xf]
  %v49 = vld [vmem:[%s1 + $0x6c] sm:$0xf]
  %v50 = vld [vmem:[%s1 + $0x70] sm:$0xf]
  %v51 = vld [vmem:[%s1 + $0x74] sm:$0xf]
  %v52 = vld [vmem:[%s1 + $0x78] sm:$0xf]
  %v53 = vld [vmem:[%s1 + $0x7c] sm:$0xf]
  %v58 = vunpack.c.l.b16 %v18
  %v59 = vunpack.c.h.b16 %v18
  %v60 = vunpack.c.l.b16 %v19
  %v61 = vunpack.c.h.b16 %v19
  %v62 = vunpack.c.l.b16 %v20
  %v63 = vunpack.c.h.b16 %v20
  %v64 = vunpack.c.l.b16 %v21
  %v65 = vunpack.c.h.b16 %v21
  %v66 = vpack.c.b16 %v60, %v58
  %v67 = vpack.c.b16 %v61, %v59
  %v68 = vpack.c.b16 %v64, %v62
  %v69 = vpack.c.b16 %v65, %v63
  %v106 = vunpack.c.l.b16 %v22
  %v107 = vunpack.c.l.b16 %v23
  %v108 = vunpack.c.l.b16 %v24
  %v109 = vunpack.c.l.b16 %v25
  %v110 = vunpack.c.l.b16 %v26
  %v111 = vunpack.c.l.b16 %v27
  %v112 = vunpack.c.l.b16 %v28
  %v113 = vunpack.c.l.b16 %v29
  %v114 = vunpack.c.l.b16 %v30
  %v115 = vunpack.c.l.b16 %v31
  %v116 = vunpack.c.l.b16 %v32
  %v117 = vunpack.c.l.b16 %v33
  %v118 = vunpack.c.l.b16 %v34
  %v119 = vunpack.c.l.b16 %v35
  %v120 = vunpack.c.l.b16 %v36
  %v121 = vunpack.c.l.b16 %v37
  %v122 = vunpack.c.l.b16 %v38
  %v123 = vunpack.c.l.b16 %v39
  %v124 = vunpack.c.l.b16 %v40
  %v125 = vunpack.c.l.b16 %v41
  %v126 = vunpack.c.l.b16 %v42
  %v127 = vunpack.c.l.b16 %v43
  %v128 = vunpack.c.l.b16 %v44
  %v129 = vunpack.c.l.b16 %v45
  %v130 = vunpack.c.l.b16 %v46
  %v131 = vunpack.c.l.b16 %v47
  %v132 = vunpack.c.l.b16 %v48
  %v133 = vunpack.c.l.b16 %v49
  %v134 = vunpack.c.l.b16 %v50
  %v135 = vunpack.c.l.b16 %v51
  %v136 = vunpack.c.l.b16 %v52
  %v137 = vunpack.c.l.b16 %v53
  %v138 = vpack.c.b16 %v107, %v106
  %v139 = vpack.c.b16 %v109, %v108
  %v140 = vpack.c.b16 %v111, %v110
  %v141 = vpack.c.b16 %v113, %v112
  %v142 = vpack.c.b16 %v115, %v114
  %v143 = vpack.c.b16 %v117, %v116
  %v144 = vpack.c.b16 %v119, %v118
  %v145 = vpack.c.b16 %v121, %v120
  %v146 = vpack.c.b16 %v123, %v122
  %v147 = vpack.c.b16 %v125, %v124
  %v148 = vpack.c.b16 %v127, %v126
  %v149 = vpack.c.b16 %v129, %v128
  %v150 = vpack.c.b16 %v131, %v130
  %v151 = vpack.c.b16 %v133, %v132
  %v152 = vpack.c.b16 %v135, %v134
  %v153 = vpack.c.b16 %v137, %v136
  %170 = vmatprep.subr.bf16.mxu0 0
  %171 = vmatpush1.bf16.msra.mxu0 %v145
  %172 = vmatprep.subr.bf16.mxu0 0
  %173 = vmatpush1.bf16.msra.mxu0 %v144
  %174 = vmatprep.subr.bf16.mxu0 0
  %175 = vmatpush1.bf16.msra.mxu0 %v143
  %176 = vmatprep.subr.bf16.mxu0 0
  %177 = vmatpush1.bf16.msra.mxu0 %v142
  %178 = vmatprep.subr.bf16.mxu0 0
  %179 = vmatpush1.bf16.msra.mxu0 %v141
  %180 = vmatprep.subr.bf16.mxu0 0
  %181 = vmatpush1.bf16.msra.mxu0 %v140
  %182 = vmatprep.subr.bf16.mxu0 0
  %183 = vmatpush1.bf16.msra.mxu0 %v139
  %184 = vmatprep.subr.bf16.mxu0 0
  %185 = vmatpush1.bf16.msra.mxu0 %v138
  %186 = vmatprep.subr.bf16.mxu0 0
  %187 = vmatpush2.bf16.msra.mxu0 %v153
  %188 = vmatprep.subr.bf16.mxu0 0
  %189 = vmatpush2.bf16.msra.mxu0 %v152
  %190 = vmatprep.subr.bf16.mxu0 0
  %191 = vmatpush2.bf16.msra.mxu0 %v151
  %192 = vmatprep.subr.bf16.mxu0 0
  %193 = vmatpush2.bf16.msra.mxu0 %v150
  %194 = vmatprep.subr.bf16.mxu0 0
  %195 = vmatpush2.bf16.msra.mxu0 %v149
  %196 = vmatprep.subr.bf16.mxu0 0
  %197 = vmatpush2.bf16.msra.mxu0 %v148
  %198 = vmatprep.subr.bf16.mxu0 0
  %199 = vmatpush2.bf16.msra.mxu0 %v147
  %200 = vmatprep.subr.bf16.mxu0 0
  %201 = vmatpush2.bf16.msra.mxu0 %v146
  %202 = vmatprep.mubr.bf16.mxu0 %v67
  %203 = vmatmul.mubr.bf16.gmra.mxu0 %v66
  %v204 = vpop.f32.mrf.mxu0
  %v205 = vadd.f32 0.0, %v204
  %v206 = vpop.f32.mrf.mxu0
  %v207 = vpop.f32.mrf.mxu0
  %v208 = vadd.f32 0.0, %v207
  %v209 = vpop.f32.mrf.mxu0
  %210 = vmatprep.mubr.bf16.mxu0 %v69
  %211 = vmatmul.mubr.bf16.gmra.mxu0 %v68
  %v212 = vpop.f32.mrf.mxu0
  %v213 = vadd.f32 0.0, %v212
  %v214 = vpop.f32.mrf.mxu0
  %v215 = vpop.f32.mrf.mxu0
  %v216 = vadd.f32 0.0, %v215
  %v217 = vpop.f32.mrf.mxu0
  %218 = vdwg.mxu0
  %219 = vadd.xlane.f32.xlu0 %v205
  %v220 = vpop.xlane.xlu0 %219
  %221 = vadd.xlane.f32.xlu0 %v208
  %v222 = vpop.xlane.xlu0 %221
  %223 = vadd.xlane.f32.xlu0 %v213
  %v224 = vpop.xlane.xlu0 %223
  %225 = vadd.xlane.f32.xlu0 %v216
  %v226 = vpop.xlane.xlu0 %225
  %v227 = vrcp.pop 128.0
  %v228 = vmul.f32 %v220, %v227
  %v229 = vmul.f32 %v222, %v227
  %v230 = vmul.f32 %v224, %v227
  %v231 = vmul.f32 %v226, %v227
  %v232 = vsub.f32 %v205, %v228
  %v233 = vsub.f32 %v208, %v229
  %v234 = vsub.f32 %v213, %v230
  %v235 = vsub.f32 %v216, %v231
  %v236 = vmul.f32 %v232, %v232
  %v237 = vmul.f32 %v233, %v233
  %v238 = vmul.f32 %v234, %v234
  %v239 = vmul.f32 %v235, %v235
  %240 = vadd.xlane.f32.xlu0 %v236
  %v241 = vpop.xlane.xlu0 %240
  %242 = vadd.xlane.f32.xlu0 %v237
  %v243 = vpop.xlane.xlu0 %242
  %244 = vadd.xlane.f32.xlu0 %v238
  %v245 = vpop.xlane.xlu0 %244
  %246 = vadd.xlane.f32.xlu0 %v239
  %v247 = vpop.xlane.xlu0 %246
  %v248 = vmul.f32 %v241, %v227
  %v249 = vmul.f32 %v243, %v227
  %v250 = vmul.f32 %v245, %v227
  %v251 = vmul.f32 %v247, %v227
  %v252 = vadd.f32 %v248, 1e-05
  %v253 = vadd.f32 %v249, 1e-05
  %v254 = vadd.f32 %v250, 1e-05
  %v255 = vadd.f32 %v251, 1e-05
  %v256 = vrsqrt.pop %v252
  %v257 = vrsqrt.pop %v253
  %v258 = vrsqrt.pop %v254
  %v259 = vrsqrt.pop %v255
  %v260 = vmul.f32 %v232, %v256
  %v261 = vmul.f32 %v233, %v257
  %v262 = vmul.f32 %v234, %v258
  %v263 = vmul.f32 %v235, %v259
  %v264 = vld [vmem:[%s2] sm:$0xff]
  %v265 = vld [vmem:[%s2 + $0x8] sm:$0xff]
  %v266 = vld [vmem:[%s2 + $0x10] sm:$0xff]
  %v267 = vld [vmem:[%s2 + $0x18] sm:$0xff]
  %269 = vset.pattern.permute.xlu0 0
  %270 = vperm.xlu0 %269, %v264
  %v271 = vpop.permute.xlu0 %270
  %274 = vset.pattern.permute.xlu0 0
  %275 = vperm.xlu0 %274, %v265
  %v276 = vpop.permute.xlu0 %275
  %279 = vset.pattern.permute.xlu0 0
  %280 = vperm.xlu0 %279, %v266
  %v281 = vpop.permute.xlu0 %280
  %284 = vset.pattern.permute.xlu0 0
  %285 = vperm.xlu0 %284, %v267
  %v286 = vpop.permute.xlu0 %285
  %v288 = vmul.f32 %v260, %v271
  %v289 = vmul.f32 %v261, %v276
  %v290 = vmul.f32 %v262, %v281
  %v291 = vmul.f32 %v263, %v286
  %v292 = vld [vmem:[%s3] sm:$0xff]
  %v293 = vld [vmem:[%s3 + $0x8] sm:$0xff]
  %v294 = vld [vmem:[%s3 + $0x10] sm:$0xff]
  %v295 = vld [vmem:[%s3 + $0x18] sm:$0xff]
  %297 = vset.pattern.permute.xlu0 0
  %298 = vperm.xlu0 %297, %v292
  %v299 = vpop.permute.xlu0 %298
  %302 = vset.pattern.permute.xlu0 0
  %303 = vperm.xlu0 %302, %v293
  %v304 = vpop.permute.xlu0 %303
  %307 = vset.pattern.permute.xlu0 0
  %308 = vperm.xlu0 %307, %v294
  %v309 = vpop.permute.xlu0 %308
  %312 = vset.pattern.permute.xlu0 0
  %313 = vperm.xlu0 %312, %v295
  %v314 = vpop.permute.xlu0 %313
  %v316 = vadd.f32 %v288, %v299
  %v317 = vadd.f32 %v289, %v304
  %v318 = vadd.f32 %v290, %v309
  %v319 = vadd.f32 %v291, %v314
  %v320 = vmul.f32 %v316, 0.2
  %v321 = vmul.f32 %v317, 0.2
  %v322 = vmul.f32 %v318, 0.2
  %v323 = vmul.f32 %v319, 0.2
  %v324 = vmax.f32 %v316, %v320
  %v325 = vmax.f32 %v317, %v321
  %v326 = vmax.f32 %v318, %v322
  %v327 = vmax.f32 %v319, %v323
  %v328 = vpack.c.bf16 %v325, %v324
  %v329 = vpack.c.bf16 %v327, %v326
  %v332 = vunpack.c.l.b16 %v328
  %v333 = vunpack.c.h.b16 %v328
  %v334 = vunpack.c.l.b16 %v329
  %v335 = vunpack.c.h.b16 %v329
  %v336 = vpack.c.b16 %v332, %v332
  %v337 = vpack.c.b16 %v333, %v333
  %v338 = vpack.c.b16 %v334, %v334
  %v339 = vpack.c.b16 %v335, %v335
  %344 = vst [vmem:[%s4] sm:$0xf] %v336
  %345 = vst [vmem:[%s4 + $0x4] sm:$0xf] %v337
  %346 = vst [vmem:[%s4 + $0x8] sm:$0xf] %v338
  %347 = vst [vmem:[%s4 + $0xc] sm:$0xf] %v339
  // Predicated region
  $region18: #{discriminator_forward.7} parent=0 // pred_check
    _
  $region19: #{discriminator_forward.7} parent=0 // pred_check_branch
    %349 = sbr.rel (0) target = $region21
  $region20: #{discriminator_forward.7} parent=0 // pred_region
    _
  $region21: #{discriminator_forward.7} parent=0 // pred_fallthru
    _
  // Predicated region
  $region22: #{discriminator_forward.7} parent=0 // pred_check
    _
  $region23: #{discriminator_forward.7} parent=0 // pred_check_branch
    %351 = sbr.rel (0) target = $region25
  $region24: #{discriminator_forward.7} parent=0 // pred_region
    _
  $region25: #{discriminator_forward.7} parent=0 // pred_fallthru
    _

// kernel: discriminator_forward.8
$region0: #{discriminator_forward.8}
  #allocation0 [shape = 'u32[]', space=smem, size = 0x4, offset = 0x4, fixed_abs, tag = 'smem constant byte address 0x4 - core index']
  #allocation1 [shape = 'u32[144,128]{1,0:T(1,128)}', space=vmem, size = 0x12000, scoped, tag = 'internal scratch']
  %s0 = inlined_call_operand.vmem [shape: bf16[64,512], index: 0, kind: input, shape index: {}]
  %s1 = inlined_call_operand.vmem [shape: bf16[512,32], index: 1, kind: input, shape index: {}]
  %s2 = inlined_call_operand.vmem [shape: f32[64,1], index: 2, kind: input, shape index: {}]
  %s3 = inlined_call_operand.vmem [shape: f32[64,1], index: 3, kind: input, shape index: {}]
  %s4 = inlined_call_operand.vmem [shape: bf16[64,32], index: 4, kind: output, shape index: {}]
  %s5 = sld [smem:[#allocation0]]
  $region26: #{discriminator_forward.8} parent=0
    _
  %s7 = ssub.s32 1, %s5
  %s8 = scalar_select 0, %s7, %s5
  // Predicated region
  $region2: #{discriminator_forward.8} parent=0 // pred_check
    _
  $region3: #{discriminator_forward.8} parent=0 // pred_check_branch
    %10 = sbr.rel (0) target = $region5
  $region4: #{discriminator_forward.8} parent=0 // pred_region
    _
  $region5: #{discriminator_forward.8} parent=0 // pred_fallthru
    _
  // Predicated region
  $region6: #{discriminator_forward.8} parent=0 // pred_check
    _
  $region7: #{discriminator_forward.8} parent=0 // pred_check_branch
    %12 = sbr.rel (0) target = $region9
  $region8: #{discriminator_forward.8} parent=0 // pred_region
    _
  $region9: #{discriminator_forward.8} parent=0 // pred_fallthru
    _
  // Predicated region
  $region10: #{discriminator_forward.8} parent=0 // pred_check
    _
  $region11: #{discriminator_forward.8} parent=0 // pred_check_branch
    %14 = sbr.rel (0) target = $region13
  $region12: #{discriminator_forward.8} parent=0 // pred_region
    _
  $region13: #{discriminator_forward.8} parent=0 // pred_fallthru
    _
  // Predicated region
  $region14: #{discriminator_forward.8} parent=0 // pred_check
    _
  $region15: #{discriminator_forward.8} parent=0 // pred_check_branch
    %16 = sbr.rel (0) target = $region17
  $region16: #{discriminator_forward.8} parent=0 // pred_region
    _
  $region17: #{discriminator_forward.8} parent=0 // pred_fallthru
    _
  %v18 = vld [vmem:[%s0] sm:$0xff]
  %v19 = vld [vmem:[%s0 + $0x8] sm:$0xff]
  %v20 = vld [vmem:[%s0 + $0x10] sm:$0xff]
  %v21 = vld [vmem:[%s0 + $0x18] sm:$0xff]
  %v22 = vld [vmem:[%s0 + $0x20] sm:$0xff]
  %v23 = vld [vmem:[%s0 + $0x28] sm:$0xff]
  %v24 = vld [vmem:[%s0 + $0x30] sm:$0xff]
  %v25 = vld [vmem:[%s0 + $0x38] sm:$0xff]
  %v26 = vld [vmem:[%s0 + $0x40] sm:$0xff]
  %v27 = vld [vmem:[%s0 + $0x48] sm:$0xff]
  %v28 = vld [vmem:[%s0 + $0x50] sm:$0xff]
  %v29 = vld [vmem:[%s0 + $0x58] sm:$0xff]
  %v30 = vld [vmem:[%s0 + $0x60] sm:$0xff]
  %v31 = vld [vmem:[%s0 + $0x68] sm:$0xff]
  %v32 = vld [vmem:[%s0 + $0x70] sm:$0xff]
  %v33 = vld [vmem:[%s0 + $0x78] sm:$0xff]
  %v34 = vld [vmem:[%s1] sm:$0xf]
  %v35 = vld [vmem:[%s1 + $0x4] sm:$0xf]
  %v36 = vld [vmem:[%s1 + $0x8] sm:$0xf]
  %v37 = vld [vmem:[%s1 + $0xc] sm:$0xf]
  %v38 = vld [vmem:[%s1 + $0x10] sm:$0xf]
  %v39 = vld [vmem:[%s1 + $0x14] sm:$0xf]
  %v40 = vld [vmem:[%s1 + $0x18] sm:$0xf]
  %v41 = vld [vmem:[%s1 + $0x1c] sm:$0xf]
  %v42 = vld [vmem:[%s1 + $0x20] sm:$0xf]
  %v43 = vld [vmem:[%s1 + $0x24] sm:$0xf]
  %v44 = vld [vmem:[%s1 + $0x28] sm:$0xf]
  %v45 = vld [vmem:[%s1 + $0x2c] sm:$0xf]
  %v46 = vld [vmem:[%s1 + $0x30] sm:$0xf]
  %v47 = vld [vmem:[%s1 + $0x34] sm:$0xf]
  %v48 = vld [vmem:[%s1 + $0x38] sm:$0xf]
  %v49 = vld [vmem:[%s1 + $0x3c] sm:$0xf]
  %v50 = vld [vmem:[%s1 + $0x40] sm:$0xf]
  %v51 = vld [vmem:[%s1 + $0x44] sm:$0xf]
  %v52 = vld [vmem:[%s1 + $0x48] sm:$0xf]
  %v53 = vld [vmem:[%s1 + $0x4c] sm:$0xf]
  %v54 = vld [vmem:[%s1 + $0x50] sm:$0xf]
  %v55 = vld [vmem:[%s1 + $0x54] sm:$0xf]
  %v56 = vld [vmem:[%s1 + $0x58] sm:$0xf]
  %v57 = vld [vmem:[%s1 + $0x5c] sm:$0xf]
  %v58 = vld [vmem:[%s1 + $0x60] sm:$0xf]
  %v59 = vld [vmem:[%s1 + $0x64] sm:$0xf]
  %v60 = vld [vmem:[%s1 + $0x68] sm:$0xf]
  %v61 = vld [vmem:[%s1 + $0x6c] sm:$0xf]
  %v62 = vld [vmem:[%s1 + $0x70] sm:$0xf]
  %v63 = vld [vmem:[%s1 + $0x74] sm:$0xf]
  %v64 = vld [vmem:[%s1 + $0x78] sm:$0xf]
  %v65 = vld [vmem:[%s1 + $0x7c] sm:$0xf]
  %v66 = vld [vmem:[%s1 + $0x80] sm:$0xf]
  %v67 = vld [vmem:[%s1 + $0x84] sm:$0xf]
  %v68 = vld [vmem:[%s1 + $0x88] sm:$0xf]
  %v69 = vld [vmem:[%s1 + $0x8c] sm:$0xf]
  %v70 = vld [vmem:[%s1 + $0x90] sm:$0xf]
  %v71 = vld [vmem:[%s1 + $0x94] sm:$0xf]
  %v72 = vld [vmem:[%s1 + $0x98] sm:$0xf]
  %v73 = vld [vmem:[%s1 + $0x9c] sm:$0xf]
  %v74 = vld [vmem:[%s1 + $0xa0] sm:$0xf]
  %v75 = vld [vmem:[%s1 + $0xa4] sm:$0xf]
  %v76 = vld [vmem:[%s1 + $0xa8] sm:$0xf]
  %v77 = vld [vmem:[%s1 + $0xac] sm:$0xf]
  %v78 = vld [vmem:[%s1 + $0xb0] sm:$0xf]
  %v79 = vld [vmem:[%s1 + $0xb4] sm:$0xf]
  %v80 = vld [vmem:[%s1 + $0xb8] sm:$0xf]
  %v81 = vld [vmem:[%s1 + $0xbc] sm:$0xf]
  %v82 = vld [vmem:[%s1 + $0xc0] sm:$0xf]
  %v83 = vld [vmem:[%s1 + $0xc4] sm:$0xf]
  %v84 = vld [vmem:[%s1 + $0xc8] sm:$0xf]
  %v85 = vld [vmem:[%s1 + $0xcc] sm:$0xf]
  %v86 = vld [vmem:[%s1 + $0xd0] sm:$0xf]
  %v87 = vld [vmem:[%s1 + $0xd4] sm:$0xf]
  %v88 = vld [vmem:[%s1 + $0xd8] sm:$0xf]
  %v89 = vld [vmem:[%s1 + $0xdc] sm:$0xf]
  %v90 = vld [vmem:[%s1 + $0xe0] sm:$0xf]
  %v91 = vld [vmem:[%s1 + $0xe4] sm:$0xf]
  %v92 = vld [vmem:[%s1 + $0xe8] sm:$0xf]
  %v93 = vld [vmem:[%s1 + $0xec] sm:$0xf]
  %v94 = vld [vmem:[%s1 + $0xf0] sm:$0xf]
  %v95 = vld [vmem:[%s1 + $0xf4] sm:$0xf]
  %v96 = vld [vmem:[%s1 + $0xf8] sm:$0xf]
  %v97 = vld [vmem:[%s1 + $0xfc] sm:$0xf]
  %v114 = vunpack.c.l.b16 %v18
  %v115 = vunpack.c.h.b16 %v18
  %v116 = vunpack.c.l.b16 %v19
  %v117 = vunpack.c.h.b16 %v19
  %v118 = vunpack.c.l.b16 %v20
  %v119 = vunpack.c.h.b16 %v20
  %v120 = vunpack.c.l.b16 %v21
  %v121 = vunpack.c.h.b16 %v21
  %v122 = vunpack.c.l.b16 %v22
  %v123 = vunpack.c.h.b16 %v22
  %v124 = vunpack.c.l.b16 %v23
  %v125 = vunpack.c.h.b16 %v23
  %v126 = vunpack.c.l.b16 %v24
  %v127 = vunpack.c.h.b16 %v24
  %v128 = vunpack.c.l.b16 %v25
  %v129 = vunpack.c.h.b16 %v25
  %v130 = vunpack.c.l.b16 %v26
  %v131 = vunpack.c.h.b16 %v26
  %v132 = vunpack.c.l.b16 %v27
  %v133 = vunpack.c.h.b16 %v27
  %v134 = vunpack.c.l.b16 %v28
  %v135 = vunpack.c.h.b16 %v28
  %v136 = vunpack.c.l.b16 %v29
  %v137 = vunpack.c.h.b16 %v29
  %v138 = vunpack.c.l.b16 %v30
  %v139 = vunpack.c.h.b16 %v30
  %v140 = vunpack.c.l.b16 %v31
  %v141 = vunpack.c.h.b16 %v31
  %v142 = vunpack.c.l.b16 %v32
  %v143 = vunpack.c.h.b16 %v32
  %v144 = vunpack.c.l.b16 %v33
  %v145 = vunpack.c.h.b16 %v33
  %v146 = vpack.c.b16 %v118, %v114
  %v147 = vpack.c.b16 %v119, %v115
  %v148 = vpack.c.b16 %v120, %v116
  %v149 = vpack.c.b16 %v121, %v117
  %v150 = vpack.c.b16 %v126, %v122
  %v151 = vpack.c.b16 %v127, %v123
  %v152 = vpack.c.b16 %v128, %v124
  %v153 = vpack.c.b16 %v129, %v125
  %v154 = vpack.c.b16 %v134, %v130
  %v155 = vpack.c.b16 %v135, %v131
  %v156 = vpack.c.b16 %v136, %v132
  %v157 = vpack.c.b16 %v137, %v133
  %v158 = vpack.c.b16 %v142, %v138
  %v159 = vpack.c.b16 %v143, %v139
  %v160 = vpack.c.b16 %v144, %v140
  %v161 = vpack.c.b16 %v145, %v141
  %v242 = vunpack.c.l.b16 %v34
  %v243 = vunpack.c.l.b16 %v35
  %v244 = vunpack.c.l.b16 %v36
  %v245 = vunpack.c.l.b16 %v37
  %v246 = vunpack.c.l.b16 %v38
  %v247 = vunpack.c.l.b16 %v39
  %v248 = vunpack.c.l.b16 %v40
  %v249 = vunpack.c.l.b16 %v41
  %v250 = vunpack.c.l.b16 %v42
  %v251 = vunpack.c.l.b16 %v43
  %v252 = vunpack.c.l.b16 %v44
  %v253 = vunpack.c.l.b16 %v45
  %v254 = vunpack.c.l.b16 %v46
  %v255 = vunpack.c.l.b16 %v47
  %v256 = vunpack.c.l.b16 %v48
  %v257 = vunpack.c.l.b16 %v49
  %v258 = vunpack.c.l.b16 %v50
  %v259 = vunpack.c.l.b16 %v51
  %v260 = vunpack.c.l.b16 %v52
  %v261 = vunpack.c.l.b16 %v53
  %v262 = vunpack.c.l.b16 %v54
  %v263 = vunpack.c.l.b16 %v55
  %v264 = vunpack.c.l.b16 %v56
  %v265 = vunpack.c.l.b16 %v57
  %v266 = vunpack.c.l.b16 %v58
  %v267 = vunpack.c.l.b16 %v59
  %v268 = vunpack.c.l.b16 %v60
  %v269 = vunpack.c.l.b16 %v61
  %v270 = vunpack.c.l.b16 %v62
  %v271 = vunpack.c.l.b16 %v63
  %v272 = vunpack.c.l.b16 %v64
  %v273 = vunpack.c.l.b16 %v65
  %v274 = vunpack.c.l.b16 %v66
  %v275 = vunpack.c.l.b16 %v67
  %v276 = vunpack.c.l.b16 %v68
  %v277 = vunpack.c.l.b16 %v69
  %v278 = vunpack.c.l.b16 %v70
  %v279 = vunpack.c.l.b16 %v71
  %v280 = vunpack.c.l.b16 %v72
  %v281 = vunpack.c.l.b16 %v73
  %v282 = vunpack.c.l.b16 %v74
  %v283 = vunpack.c.l.b16 %v75
  %v284 = vunpack.c.l.b16 %v76
  %v285 = vunpack.c.l.b16 %v77
  %v286 = vunpack.c.l.b16 %v78
  %v287 = vunpack.c.l.b16 %v79
  %v288 = vunpack.c.l.b16 %v80
  %v289 = vunpack.c.l.b16 %v81
  %v290 = vunpack.c.l.b16 %v82
  %v291 = vunpack.c.l.b16 %v83
  %v292 = vunpack.c.l.b16 %v84
  %v293 = vunpack.c.l.b16 %v85
  %v294 = vunpack.c.l.b16 %v86
  %v295 = vunpack.c.l.b16 %v87
  %v296 = vunpack.c.l.b16 %v88
  %v297 = vunpack.c.l.b16 %v89
  %v298 = vunpack.c.l.b16 %v90
  %v299 = vunpack.c.l.b16 %v91
  %v300 = vunpack.c.l.b16 %v92
  %v301 = vunpack.c.l.b16 %v93
  %v302 = vunpack.c.l.b16 %v94
  %v303 = vunpack.c.l.b16 %v95
  %v304 = vunpack.c.l.b16 %v96
  %v305 = vunpack.c.l.b16 %v97
  %v306 = vpack.c.b16 %v243, %v242
  %v307 = vpack.c.b16 %v245, %v244
  %v308 = vpack.c.b16 %v247, %v246
  %v309 = vpack.c.b16 %v249, %v248
  %v310 = vpack.c.b16 %v251, %v250
  %v311 = vpack.c.b16 %v253, %v252
  %v312 = vpack.c.b16 %v255, %v254
  %v313 = vpack.c.b16 %v257, %v256
  %v314 = vpack.c.b16 %v259, %v258
  %v315 = vpack.c.b16 %v261, %v260
  %v316 = vpack.c.b16 %v263, %v262
  %v317 = vpack.c.b16 %v265, %v264
  %v318 = vpack.c.b16 %v267, %v266
  %v319 = vpack.c.b16 %v269, %v268
  %v320 = vpack.c.b16 %v271, %v270
  %v321 = vpack.c.b16 %v273, %v272
  %v322 = vpack.c.b16 %v275, %v274
  %v323 = vpack.c.b16 %v277, %v276
  %v324 = vpack.c.b16 %v279, %v278
  %v325 = vpack.c.b16 %v281, %v280
  %v326 = vpack.c.b16 %v283, %v282
  %v327 = vpack.c.b16 %v285, %v284
  %v328 = vpack.c.b16 %v287, %v286
  %v329 = vpack.c.b16 %v289, %v288
  %v330 = vpack.c.b16 %v291, %v290
  %v331 = vpack.c.b16 %v293, %v292
  %v332 = vpack.c.b16 %v295, %v294
  %v333 = vpack.c.b16 %v297, %v296
  %v334 = vpack.c.b16 %v299, %v298
  %v335 = vpack.c.b16 %v301, %v300
  %v336 = vpack.c.b16 %v303, %v302
  %v337 = vpack.c.b16 %v305, %v304
  %370 = vmatprep.subr.bf16.mxu0 0
  %371 = vmatpush1.bf16.msra.mxu0 %v313
  %372 = vmatprep.subr.bf16.mxu0 0
  %373 = vmatpush1.bf16.msra.mxu0 %v312
  %374 = vmatprep.subr.bf16.mxu0 0
  %375 = vmatpush1.bf16.msra.mxu0 %v311
  %376 = vmatprep.subr.bf16.mxu0 0
  %377 = vmatpush1.bf16.msra.mxu0 %v310
  %378 = vmatprep.subr.bf16.mxu0 0
  %379 = vmatpush1.bf16.msra.mxu0 %v309
  %380 = vmatprep.subr.bf16.mxu0 0
  %381 = vmatpush1.bf16.msra.mxu0 %v308
  %382 = vmatprep.subr.bf16.mxu0 0
  %383 = vmatpush1.bf16.msra.mxu0 %v307
  %384 = vmatprep.subr.bf16.mxu0 0
  %385 = vmatpush1.bf16.msra.mxu0 %v306
  %386 = vmatprep.subr.bf16.mxu0 0
  %387 = vmatpush2.bf16.msra.mxu0 %v321
  %388 = vmatprep.subr.bf16.mxu0 0
  %389 = vmatpush2.bf16.msra.mxu0 %v320
  %390 = vmatprep.subr.bf16.mxu0 0
  %391 = vmatpush2.bf16.msra.mxu0 %v319
  %392 = vmatprep.subr.bf16.mxu0 0
  %393 = vmatpush2.bf16.msra.mxu0 %v318
  %394 = vmatprep.subr.bf16.mxu0 0
  %395 = vmatpush2.bf16.msra.mxu0 %v317
  %396 = vmatprep.subr.bf16.mxu0 0
  %397 = vmatpush2.bf16.msra.mxu0 %v316
  %398 = vmatprep.subr.bf16.mxu0 0
  %399 = vmatpush2.bf16.msra.mxu0 %v315
  %400 = vmatprep.subr.bf16.mxu0 0
  %401 = vmatpush2.bf16.msra.mxu0 %v314
  %402 = vmatprep.mubr.bf16.mxu0 %v147
  %403 = vmatmul.mubr.bf16.gmra.mxu0 %v146
  %v404 = vpop.f32.mrf.mxu0
  %v405 = vadd.f32 0.0, %v404
  %v406 = vpop.f32.mrf.mxu0
  %v407 = vpop.f32.mrf.mxu0
  %v408 = vadd.f32 0.0, %v407
  %v409 = vpop.f32.mrf.mxu0
  %410 = vmatprep.mubr.bf16.mxu0 %v151
  %411 = vmatmul.mubr.bf16.gmra.mxu0 %v150
  %v412 = vpop.f32.mrf.mxu0
  %v413 = vadd.f32 0.0, %v412
  %v414 = vpop.f32.mrf.mxu0
  %v415 = vpop.f32.mrf.mxu0
  %v416 = vadd.f32 0.0, %v415
  %v417 = vpop.f32.mrf.mxu0
  %418 = vmatprep.mubr.bf16.mxu0 %v155
  %419 = vmatmul.mubr.bf16.gmra.mxu0 %v154
  %v420 = vpop.f32.mrf.mxu0
  %v421 = vadd.f32 0.0, %v420
  %v422 = vpop.f32.mrf.mxu0
  %v423 = vpop.f32.mrf.mxu0
  %v424 = vadd.f32 0.0, %v423
  %v425 = vpop.f32.mrf.mxu0
  %426 = vmatprep.mubr.bf16.mxu0 %v159
  %427 = vmatmul.mubr.bf16.gmra.mxu0 %v158
  %v428 = vpop.f32.mrf.mxu0
  %v429 = vadd.f32 0.0, %v428
  %v430 = vpop.f32.mrf.mxu0
  %v431 = vpop.f32.mrf.mxu0
  %v432 = vadd.f32 0.0, %v431
  %v433 = vpop.f32.mrf.mxu0
  %434 = vdwg.mxu0
  %435 = vmatprep.subr.bf16.mxu0 0
  %436 = vmatpush1.bf16.msra.mxu0 %v329
  %437 = vmatprep.subr.bf16.mxu0 0
  %438 = vmatpush1.bf16.msra.mxu0 %v328
  %439 = vmatprep.subr.bf16.mxu0 0
  %440 = vmatpush1.bf16.msra.mxu0 %v327
  %441 = vmatprep.subr.bf16.mxu0 0
  %442 = vmatpush1.bf16.msra.mxu0 %v326
  %443 = vmatprep.subr.bf16.mxu0 0
  %444 = vmatpush1.bf16.msra.mxu0 %v325
  %445 = vmatprep.subr.bf16.mxu0 0
  %446 = vmatpush1.bf16.msra.mxu0 %v324
  %447 = vmatprep.subr.bf16.mxu0 0
  %448 = vmatpush1.bf16.msra.mxu0 %v323
  %449 = vmatprep.subr.bf16.mxu0 0
  %450 = vmatpush1.bf16.msra.mxu0 %v322
  %451 = vmatprep.subr.bf16.mxu0 0
  %452 = vmatpush2.bf16.msra.mxu0 %v337
  %453 = vmatprep.subr.bf16.mxu0 0
  %454 = vmatpush2.bf16.msra.mxu0 %v336
  %455 = vmatprep.subr.bf16.mxu0 0
  %456 = vmatpush2.bf16.msra.mxu0 %v335
  %457 = vmatprep.subr.bf16.mxu0 0
  %458 = vmatpush2.bf16.msra.mxu0 %v334
  %459 = vmatprep.subr.bf16.mxu0 0
  %460 = vmatpush2.bf16.msra.mxu0 %v333
  %461 = vmatprep.subr.bf16.mxu0 0
  %462 = vmatpush2.bf16.msra.mxu0 %v332
  %463 = vmatprep.subr.bf16.mxu0 0
  %464 = vmatpush2.bf16.msra.mxu0 %v331
  %465 = vmatprep.subr.bf16.mxu0 0
  %466 = vmatpush2.bf16.msra.mxu0 %v330
  %467 = vmatprep.mubr.bf16.mxu0 %v149
  %468 = vmatmul.mubr.bf16.gmra.mxu0 %v148
  %v469 = vpop.f32.mrf.mxu0
  %v470 = vadd.f32 %v405, %v469
  %v471 = vpop.f32.mrf.mxu0
  %v472 = vpop.f32.mrf.mxu0
  %v473 = vadd.f32 %v408, %v472
  %v474 = vpop.f32.mrf.mxu0
  %475 = vmatprep.mubr.bf16.mxu0 %v153
  %476 = vmatmul.mubr.bf16.gmra.mxu0 %v152
  %v477 = vpop.f32.mrf.mxu0
  %v478 = vadd.f32 %v413, %v477
  %v479 = vpop.f32.mrf.mxu0
  %v480 = vpop.f32.mrf.mxu0
  %v481 = vadd.f32 %v416, %v480
  %v482 = vpop.f32.mrf.mxu0
  %483 = vmatprep.mubr.bf16.mxu0 %v157
  %484 = vmatmul.mubr.bf16.gmra.mxu0 %v156
  %v485 = vpop.f32.mrf.mxu0
  %v486 = vadd.f32 %v421, %v485
  %v487 = vpop.f32.mrf.mxu0
  %v488 = vpop.f32.mrf.mxu0
  %v489 = vadd.f32 %v424, %v488
  %v490 = vpop.f32.mrf.mxu0
  %491 = vmatprep.mubr.bf16.mxu0 %v161
  %492 = vmatmul.mubr.bf16.gmra.mxu0 %v160
  %v493 = vpop.f32.mrf.mxu0
  %v494 = vadd.f32 %v429, %v493
  %v495 = vpop.f32.mrf.mxu0
  %v496 = vpop.f32.mrf.mxu0
  %v497 = vadd.f32 %v432, %v496
  %v498 = vpop.f32.mrf.mxu0
  %499 = vdwg.mxu0
  %vm500 = vcmask 261120
  %v501 = vsel %vm500, %v470, 0.0
  %502 = vadd.xlane.f32.xlu0 %v501
  %v503 = vpop.xlane.xlu0 %502
  %v504 = vsel %vm500, %v473, 0.0
  %505 = vadd.xlane.f32.xlu0 %v504
  %v506 = vpop.xlane.xlu0 %505
  %v507 = vsel %vm500, %v478, 0.0
  %508 = vadd.xlane.f32.xlu0 %v507
  %v509 = vpop.xlane.xlu0 %508
  %v510 = vsel %vm500, %v481, 0.0
  %511 = vadd.xlane.f32.xlu0 %v510
  %v512 = vpop.xlane.xlu0 %511
  %v513 = vsel %vm500, %v486, 0.0
  %514 = vadd.xlane.f32.xlu0 %v513
  %v515 = vpop.xlane.xlu0 %514
  %v516 = vsel %vm500, %v489, 0.0
  %517 = vadd.xlane.f32.xlu0 %v516
  %v518 = vpop.xlane.xlu0 %517
  %v519 = vsel %vm500, %v494, 0.0
  %520 = vadd.xlane.f32.xlu0 %v519
  %v521 = vpop.xlane.xlu0 %520
  %v522 = vsel %vm500, %v497, 0.0
  %523 = vadd.xlane.f32.xlu0 %v522
  %v524 = vpop.xlane.xlu0 %523
  %v525 = vrcp.pop 32.0
  %v526 = vmul.f32 %v503, %v525
  %v527 = vmul.f32 %v506, %v525
  %v528 = vmul.f32 %v509, %v525
  %v529 = vmul.f32 %v512, %v525
  %v530 = vmul.f32 %v515, %v525
  %v531 = vmul.f32 %v518, %v525
  %v532 = vmul.f32 %v521, %v525
  %v533 = vmul.f32 %v524, %v525
  %v534 = vsub.f32 %v470, %v526
  %v535 = vsub.f32 %v473, %v527
  %v536 = vsub.f32 %v478, %v528
  %v537 = vsub.f32 %v481, %v529
  %v538 = vsub.f32 %v486, %v530
  %v539 = vsub.f32 %v489, %v531
  %v540 = vsub.f32 %v494, %v532
  %v541 = vsub.f32 %v497, %v533
  %v542 = vmul.f32 %v534, %v534
  %v543 = vmul.f32 %v535, %v535
  %v544 = vmul.f32 %v536, %v536
  %v545 = vmul.f32 %v537, %v537
  %v546 = vmul.f32 %v538, %v538
  %v547 = vmul.f32 %v539, %v539
  %v548 = vmul.f32 %v540, %v540
  %v549 = vmul.f32 %v541, %v541
  %v550 = vsel %vm500, %v542, 0.0
  %551 = vadd.xlane.f32.xlu0 %v550
  %v552 = vpop.xlane.xlu0 %551
  %v553 = vsel %vm500, %v543, 0.0
  %554 = vadd.xlane.f32.xlu0 %v553
  %v555 = vpop.xlane.xlu0 %554
  %v556 = vsel %vm500, %v544, 0.0
  %557 = vadd.xlane.f32.xlu0 %v556
  %v558 = vpop.xlane.xlu0 %557
  %v559 = vsel %vm500, %v545, 0.0
  %560 = vadd.xlane.f32.xlu0 %v559
  %v561 = vpop.xlane.xlu0 %560
  %v562 = vsel %vm500, %v546, 0.0
  %563 = vadd.xlane.f32.xlu0 %v562
  %v564 = vpop.xlane.xlu0 %563
  %v565 = vsel %vm500, %v547, 0.0
  %566 = vadd.xlane.f32.xlu0 %v565
  %v567 = vpop.xlane.xlu0 %566
  %v568 = vsel %vm500, %v548, 0.0
  %569 = vadd.xlane.f32.xlu0 %v568
  %v570 = vpop.xlane.xlu0 %569
  %v571 = vsel %vm500, %v549, 0.0
  %572 = vadd.xlane.f32.xlu0 %v571
  %v573 = vpop.xlane.xlu0 %572
  %v574 = vmul.f32 %v552, %v525
  %v575 = vmul.f32 %v555, %v525
  %v576 = vmul.f32 %v558, %v525
  %v577 = vmul.f32 %v561, %v525
  %v578 = vmul.f32 %v564, %v525
  %v579 = vmul.f32 %v567, %v525
  %v580 = vmul.f32 %v570, %v525
  %v581 = vmul.f32 %v573, %v525
  %v582 = vadd.f32 %v574, 1e-05
  %v583 = vadd.f32 %v575, 1e-05
  %v584 = vadd.f32 %v576, 1e-05
  %v585 = vadd.f32 %v577, 1e-05
  %v586 = vadd.f32 %v578, 1e-05
  %v587 = vadd.f32 %v579, 1e-05
  %v588 = vadd.f32 %v580, 1e-05
  %v589 = vadd.f32 %v581, 1e-05
  %v590 = vrsqrt.pop %v582
  %v591 = vrsqrt.pop %v583
  %v592 = vrsqrt.pop %v584
  %v593 = vrsqrt.pop %v585
  %v594 = vrsqrt.pop %v586
  %v595 = vrsqrt.pop %v587
  %v596 = vrsqrt.pop %v588
  %v597 = vrsqrt.pop %v589
  %v598 = vmul.f32 %v534, %v590
  %v599 = vmul.f32 %v535, %v591
  %v600 = vmul.f32 %v536, %v592
  %v601 = vmul.f32 %v537, %v593
  %v602 = vmul.f32 %v538, %v594
  %v603 = vmul.f32 %v539, %v595
  %v604 = vmul.f32 %v540, %v596
  %v605 = vmul.f32 %v541, %v597
  %v606 = vld [vmem:[%s2] sm:$0xff]
  %v607 = vld [vmem:[%s2 + $0x8] sm:$0xff]
  %v608 = vld [vmem:[%s2 + $0x10] sm:$0xff]
  %v609 = vld [vmem:[%s2 + $0x18] sm:$0xff]
  %v610 = vld [vmem:[%s2 + $0x20] sm:$0xff]
  %v611 = vld [vmem:[%s2 + $0x28] sm:$0xff]
  %v612 = vld [vmem:[%s2 + $0x30] sm:$0xff]
  %v613 = vld [vmem:[%s2 + $0x38] sm:$0xff]
  %615 = vset.pattern.permute.xlu0 0
  %616 = vperm.xlu0 %615, %v606
  %v617 = vpop.permute.xlu0 %616
  %620 = vset.pattern.permute.xlu0 0
  %621 = vperm.xlu0 %620, %v607
  %v622 = vpop.permute.xlu0 %621
  %625 = vset.pattern.permute.xlu0 0
  %626 = vperm.xlu0 %625, %v608
  %v627 = vpop.permute.xlu0 %626
  %630 = vset.pattern.permute.xlu0 0
  %631 = vperm.xlu0 %630, %v609
  %v632 = vpop.permute.xlu0 %631
  %635 = vset.pattern.permute.xlu0 0
  %636 = vperm.xlu0 %635, %v610
  %v637 = vpop.permute.xlu0 %636
  %640 = vset.pattern.permute.xlu0 0
  %641 = vperm.xlu0 %640, %v611
  %v642 = vpop.permute.xlu0 %641
  %645 = vset.pattern.permute.xlu0 0
  %646 = vperm.xlu0 %645, %v612
  %v647 = vpop.permute.xlu0 %646
  %650 = vset.pattern.permute.xlu0 0
  %651 = vperm.xlu0 %650, %v613
  %v652 = vpop.permute.xlu0 %651
  %v654 = vmul.f32 %v598, %v617
  %v655 = vmul.f32 %v599, %v622
  %v656 = vmul.f32 %v600, %v627
  %v657 = vmul.f32 %v601, %v632
  %v658 = vmul.f32 %v602, %v637
  %v659 = vmul.f32 %v603, %v642
  %v660 = vmul.f32 %v604, %v647
  %v661 = vmul.f32 %v605, %v652
  %v662 = vld [vmem:[%s3] sm:$0xff]
  %v663 = vld [vmem:[%s3 + $0x8] sm:$0xff]
  %v664 = vld [vmem:[%s3 + $0x10] sm:$0xff]
  %v665 = vld [vmem:[%s3 + $0x18] sm:$0xff]
  %v666 = vld [vmem:[%s3 + $0x20] sm:$0xff]
  %v667 = vld [vmem:[%s3 + $0x28] sm:$0xff]
  %v668 = vld [vmem:[%s3 + $0x30] sm:$0xff]
  %v669 = vld [vmem:[%s3 + $0x38] sm:$0xff]
  %671 = vset.pattern.permute.xlu0 0
  %672 = vperm.xlu0 %671, %v662
  %v673 = vpop.permute.xlu0 %672
  %676 = vset.pattern.permute.xlu0 0
  %677 = vperm.xlu0 %676, %v663
  %v678 = vpop.permute.xlu0 %677
  %681 = vset.pattern.permute.xlu0 0
  %682 = vperm.xlu0 %681, %v664
  %v683 = vpop.permute.xlu0 %682
  %686 = vset.pattern.permute.xlu0 0
  %687 = vperm.xlu0 %686, %v665
  %v688 = vpop.permute.xlu0 %687
  %691 = vset.pattern.permute.xlu0 0
  %692 = vperm.xlu0 %691, %v666
  %v693 = vpop.permute.xlu0 %692
  %696 = vset.pattern.permute.xlu0 0
  %697 = vperm.xlu0 %696, %v667
  %v698 = vpop.permute.xlu0 %697
  %701 = vset.pattern.permute.xlu0 0
  %702 = vperm.xlu0 %701, %v668
  %v703 = vpop.permute.xlu0 %702
  %706 = vset.pattern.permute.xlu0 0
  %707 = vperm.xlu0 %706, %v669
  %v708 = vpop.permute.xlu0 %707
  %v710 = vadd.f32 %v654, %v673
  %v711 = vadd.f32 %v655, %v678
  %v712 = vadd.f32 %v656, %v683
  %v713 = vadd.f32 %v657, %v688
  %v714 = vadd.f32 %v658, %v693
  %v715 = vadd.f32 %v659, %v698
  %v716 = vadd.f32 %v660, %v703
  %v717 = vadd.f32 %v661, %v708
  %v718 = vmul.f32 %v710, 0.2
  %v719 = vmul.f32 %v711, 0.2
  %v720 = vmul.f32 %v712, 0.2
  %v721 = vmul.f32 %v713, 0.2
  %v722 = vmul.f32 %v714, 0.2
  %v723 = vmul.f32 %v715, 0.2
  %v724 = vmul.f32 %v716, 0.2
  %v725 = vmul.f32 %v717, 0.2
  %v726 = vmax.f32 %v710, %v718
  %v727 = vmax.f32 %v711, %v719
  %v728 = vmax.f32 %v712, %v720
  %v729 = vmax.f32 %v713, %v721
  %v730 = vmax.f32 %v714, %v722
  %v731 = vmax.f32 %v715, %v723
  %v732 = vmax.f32 %v716, %v724
  %v733 = vmax.f32 %v717, %v725
  %v734 = vpack.c.bf16 %v727, %v726
  %v735 = vpack.c.bf16 %v729, %v728
  %v736 = vpack.c.bf16 %v731, %v730
  %v737 = vpack.c.bf16 %v733, %v732
  %v742 = vunpack.c.l.b16 %v734
  %v743 = vunpack.c.h.b16 %v734
  %v744 = vunpack.c.l.b16 %v735
  %v745 = vunpack.c.h.b16 %v735
  %v746 = vunpack.c.l.b16 %v736
  %v747 = vunpack.c.h.b16 %v736
  %v748 = vunpack.c.l.b16 %v737
  %v749 = vunpack.c.h.b16 %v737
  %v750 = vpack.c.b16 %v742, %v742
  %v751 = vpack.c.b16 %v743, %v743
  %v752 = vpack.c.b16 %v744, %v744
  %v753 = vpack.c.b16 %v745, %v745
  %v754 = vpack.c.b16 %v746, %v746
  %v755 = vpack.c.b16 %v747, %v747
  %v756 = vpack.c.b16 %v748, %v748
  %v757 = vpack.c.b16 %v749, %v749
  %vm766 = vcmask 257024
  %767 = vst.msk [vmem:[%s4] sm:$0xf] %vm766, %v750
  %768 = vst.msk [vmem:[%s4 + $0x4] sm:$0xf] %vm766, %v751
  %769 = vst.msk [vmem:[%s4 + $0x8] sm:$0xf] %vm766, %v752
  %770 = vst.msk [vmem:[%s4 + $0xc] sm:$0xf] %vm766, %v753
  %771 = vst.msk [vmem:[%s4 + $0x10] sm:$0xf] %vm766, %v754
  %772 = vst.msk [vmem:[%s4 + $0x14] sm:$0xf] %vm766, %v755
  %773 = vst.msk [vmem:[%s4 + $0x18] sm:$0xf] %vm766, %v756
  %774 = vst.msk [vmem:[%s4 + $0x1c] sm:$0xf] %vm766, %v757
  // Predicated region
  $region18: #{discriminator_forward.8} parent=0 // pred_check
    _
  $region19: #{discriminator_forward.8} parent=0 // pred_check_branch
    %776 = sbr.rel (0) target = $region21
  $region20: #{discriminator_forward.8} parent=0 // pred_region
    _
  $region21: #{discriminator_forward.8} parent=0 // pred_fallthru
    _
  // Predicated region
  $region22: #{discriminator_forward.8} parent=0 // pred_check
    _
  $region23: #{discriminator_forward.8} parent=0 // pred_check_branch
    %778 = sbr.rel (0) target = $region25
  $region24: #{discriminator_forward.8} parent=0 // pred_region
    _
  $region25: #{discriminator_forward.8} parent=0 // pred_fallthru
    _

// kernel: discriminator_forward.9
$region0: #{discriminator_forward.9}
  #allocation0 [shape = 'u32[]', space=smem, size = 0x4, offset = 0x4, fixed_abs, tag = 'smem constant byte address 0x4 - core index']
  #allocation1 [shape = 'u32[144,128]{1,0:T(1,128)}', space=vmem, size = 0x12000, scoped, tag = 'internal scratch']
  #allocation2 [shape = 'f32[1,1]{1,0:T(1,128)S(1)}', space=vmem, size = 0x200, scoped, tag = 'scoped memory for discriminator_forward.9']
  %s0 = inlined_call_operand.vmem [shape: bf16[1,1024], index: 0, kind: input, shape index: {}]
  %s1 = inlined_call_operand.vmem [shape: bf16[1024,2], index: 1, kind: input, shape index: {}]
  %s2 = inlined_call_operand.<no memory space> [shape: f32[1,1], index: 2, kind: input, shape index: {}]
  %s3 = inlined_call_operand.hbm [shape: f32[1,2], index: 3, kind: output, shape index: {}]
  %s4 = sld [smem:[#allocation0]]
  $region22: #{discriminator_forward.9} parent=0
    _
  %s6 = ssub.s32 1, %s4
  %s7 = scalar_select 0, %s6, %s4
  %v8 = vstv %s2
  %9 = vst [vmem:[#allocation2] sm:$0x1] %v8
  $region1: #{discriminator_forward.9} parent=0
    #allocation3 [shape = 'u8[512]{0}', space=vmem, size = 0x400, scoped, tag = 'output window, operand 0, single buffered']
    #allocation4 [shape = 's32[1]{0}', space=sflag, size = 0x4, scoped, tag = 'scoped memory for discriminator_forward.9']
    %10 = vsyncpa [#allocation4], 0
    // Predicated region
    $region2: #{discriminator_forward.9} parent=1 // pred_check
      _
    $region3: #{discriminator_forward.9} parent=1 // pred_check_branch
      %12 = sbr.rel (0) target = $region5
    $region4: #{discriminator_forward.9} parent=1 // pred_region
      _
    $region5: #{discriminator_forward.9} parent=1 // pred_fallthru
      _
    // Predicated region
    $region6: #{discriminator_forward.9} parent=1 // pred_check
      _
    $region7: #{discriminator_forward.9} parent=1 // pred_check_branch
      %14 = sbr.rel (0) target = $region9
    $region8: #{discriminator_forward.9} parent=1 // pred_region
      _
    $region9: #{discriminator_forward.9} parent=1 // pred_fallthru
      _
    // Predicated region
    $region10: #{discriminator_forward.9} parent=1 // pred_check
      _
    $region11: #{discriminator_forward.9} parent=1 // pred_check_branch
      %16 = sbr.rel (0) target = $region13
    $region12: #{discriminator_forward.9} parent=1 // pred_region
      _
    $region13: #{discriminator_forward.9} parent=1 // pred_fallthru
      _
    %v18 = vld [vmem:[%s0] sm:$0xff]
    %v19 = vld [vmem:[%s1] sm:$0xf]
    %v20 = vld [vmem:[%s1 + $0x4] sm:$0xf]
    %v21 = vld [vmem:[%s1 + $0x8] sm:$0xf]
    %v22 = vld [vmem:[%s1 + $0xc] sm:$0xf]
    %v23 = vld [vmem:[%s1 + $0x10] sm:$0xf]
    %v24 = vld [vmem:[%s1 + $0x14] sm:$0xf]
    %v25 = vld [vmem:[%s1 + $0x18] sm:$0xf]
    %v26 = vld [vmem:[%s1 + $0x1c] sm:$0xf]
    %v27 = vld [vmem:[%s1 + $0x20] sm:$0xf]
    %v28 = vld [vmem:[%s1 + $0x24] sm:$0xf]
    %v29 = vld [vmem:[%s1 + $0x28] sm:$0xf]
    %v30 = vld [vmem:[%s1 + $0x2c] sm:$0xf]
    %v31 = vld [vmem:[%s1 + $0x30] sm:$0xf]
    %v32 = vld [vmem:[%s1 + $0x34] sm:$0xf]
    %v33 = vld [vmem:[%s1 + $0x38] sm:$0xf]
    %v34 = vld [vmem:[%s1 + $0x3c] sm:$0xf]
    %v35 = vld [vmem:[%s1 + $0x40] sm:$0xf]
    %v36 = vld [vmem:[%s1 + $0x44] sm:$0xf]
    %v37 = vld [vmem:[%s1 + $0x48] sm:$0xf]
    %v38 = vld [vmem:[%s1 + $0x4c] sm:$0xf]
    %v39 = vld [vmem:[%s1 + $0x50] sm:$0xf]
    %v40 = vld [vmem:[%s1 + $0x54] sm:$0xf]
    %v41 = vld [vmem:[%s1 + $0x58] sm:$0xf]
    %v42 = vld [vmem:[%s1 + $0x5c] sm:$0xf]
    %v43 = vld [vmem:[%s1 + $0x60] sm:$0xf]
    %v44 = vld [vmem:[%s1 + $0x64] sm:$0xf]
    %v45 = vld [vmem:[%s1 + $0x68] sm:$0xf]
    %v46 = vld [vmem:[%s1 + $0x6c] sm:$0xf]
    %v47 = vld [vmem:[%s1 + $0x70] sm:$0xf]
    %v48 = vld [vmem:[%s1 + $0x74] sm:$0xf]
    %v49 = vld [vmem:[%s1 + $0x78] sm:$0xf]
    %v50 = vld [vmem:[%s1 + $0x7c] sm:$0xf]
    %v51 = vld [vmem:[%s1 + $0x80] sm:$0xf]
    %v52 = vld [vmem:[%s1 + $0x84] sm:$0xf]
    %v53 = vld [vmem:[%s1 + $0x88] sm:$0xf]
    %v54 = vld [vmem:[%s1 + $0x8c] sm:$0xf]
    %v55 = vld [vmem:[%s1 + $0x90] sm:$0xf]
    %v56 = vld [vmem:[%s1 + $0x94] sm:$0xf]
    %v57 = vld [vmem:[%s1 + $0x98] sm:$0xf]
    %v58 = vld [vmem:[%s1 + $0x9c] sm:$0xf]
    %v59 = vld [vmem:[%s1 + $0xa0] sm:$0xf]
    %v60 = vld [vmem:[%s1 + $0xa4] sm:$0xf]
    %v61 = vld [vmem:[%s1 + $0xa8] sm:$0xf]
    %v62 = vld [vmem:[%s1 + $0xac] sm:$0xf]
    %v63 = vld [vmem:[%s1 + $0xb0] sm:$0xf]
    %v64 = vld [vmem:[%s1 + $0xb4] sm:$0xf]
    %v65 = vld [vmem:[%s1 + $0xb8] sm:$0xf]
    %v66 = vld [vmem:[%s1 + $0xbc] sm:$0xf]
    %v67 = vld [vmem:[%s1 + $0xc0] sm:$0xf]
    %v68 = vld [vmem:[%s1 + $0xc4] sm:$0xf]
    %v69 = vld [vmem:[%s1 + $0xc8] sm:$0xf]
    %v70 = vld [vmem:[%s1 + $0xcc] sm:$0xf]
    %v71 = vld [vmem:[%s1 + $0xd0] sm:$0xf]
    %v72 = vld [vmem:[%s1 + $0xd4] sm:$0xf]
    %v73 = vld [vmem:[%s1 + $0xd8] sm:$0xf]
    %v74 = vld [vmem:[%s1 + $0xdc] sm:$0xf]
    %v75 = vld [vmem:[%s1 + $0xe0] sm:$0xf]
    %v76 = vld [vmem:[%s1 + $0xe4] sm:$0xf]
    %v77 = vld [vmem:[%s1 + $0xe8] sm:$0xf]
    %v78 = vld [vmem:[%s1 + $0xec] sm:$0xf]
    %v79 = vld [vmem:[%s1 + $0xf0] sm:$0xf]
    %v80 = vld [vmem:[%s1 + $0xf4] sm:$0xf]
    %v81 = vld [vmem:[%s1 + $0xf8] sm:$0xf]
    %v82 = vld [vmem:[%s1 + $0xfc] sm:$0xf]
    %v83 = vld [vmem:[%s1 + $0x100] sm:$0xf]
    %v84 = vld [vmem:[%s1 + $0x104] sm:$0xf]
    %v85 = vld [vmem:[%s1 + $0x108] sm:$0xf]
    %v86 = vld [vmem:[%s1 + $0x10c] sm:$0xf]
    %v87 = vld [vmem:[%s1 + $0x110] sm:$0xf]
    %v88 = vld [vmem:[%s1 + $0x114] sm:$0xf]
    %v89 = vld [vmem:[%s1 + $0x118] sm:$0xf]
    %v90 = vld [vmem:[%s1 + $0x11c] sm:$0xf]
    %v91 = vld [vmem:[%s1 + $0x120] sm:$0xf]
    %v92 = vld [vmem:[%s1 + $0x124] sm:$0xf]
    %v93 = vld [vmem:[%s1 + $0x128] sm:$0xf]
    %v94 = vld [vmem:[%s1 + $0x12c] sm:$0xf]
    %v95 = vld [vmem:[%s1 + $0x130] sm:$0xf]
    %v96 = vld [vmem:[%s1 + $0x134] sm:$0xf]
    %v97 = vld [vmem:[%s1 + $0x138] sm:$0xf]
    %v98 = vld [vmem:[%s1 + $0x13c] sm:$0xf]
    %v99 = vld [vmem:[%s1 + $0x140] sm:$0xf]
    %v100 = vld [vmem:[%s1 + $0x144] sm:$0xf]
    %v101 = vld [vmem:[%s1 + $0x148] sm:$0xf]
    %v102 = vld [vmem:[%s1 + $0x14c] sm:$0xf]
    %v103 = vld [vmem:[%s1 + $0x150] sm:$0xf]
    %v104 = vld [vmem:[%s1 + $0x154] sm:$0xf]
    %v105 = vld [vmem:[%s1 + $0x158] sm:$0xf]
    %v106 = vld [vmem:[%s1 + $0x15c] sm:$0xf]
    %v107 = vld [vmem:[%s1 + $0x160] sm:$0xf]
    %v108 = vld [vmem:[%s1 + $0x164] sm:$0xf]
    %v109 = vld [vmem:[%s1 + $0x168] sm:$0xf]
    %v110 = vld [vmem:[%s1 + $0x16c] sm:$0xf]
    %v111 = vld [vmem:[%s1 + $0x170] sm:$0xf]
    %v112 = vld [vmem:[%s1 + $0x174] sm:$0xf]
    %v113 = vld [vmem:[%s1 + $0x178] sm:$0xf]
    %v114 = vld [vmem:[%s1 + $0x17c] sm:$0xf]
    %v115 = vld [vmem:[%s1 + $0x180] sm:$0xf]
    %v116 = vld [vmem:[%s1 + $0x184] sm:$0xf]
    %v117 = vld [vmem:[%s1 + $0x188] sm:$0xf]
    %v118 = vld [vmem:[%s1 + $0x18c] sm:$0xf]
    %v119 = vld [vmem:[%s1 + $0x190] sm:$0xf]
    %v120 = vld [vmem:[%s1 + $0x194] sm:$0xf]
    %v121 = vld [vmem:[%s1 + $0x198] sm:$0xf]
    %v122 = vld [vmem:[%s1 + $0x19c] sm:$0xf]
    %v123 = vld [vmem:[%s1 + $0x1a0] sm:$0xf]
    %v124 = vld [vmem:[%s1 + $0x1a4] sm:$0xf]
    %v125 = vld [vmem:[%s1 + $0x1a8] sm:$0xf]
    %v126 = vld [vmem:[%s1 + $0x1ac] sm:$0xf]
    %v127 = vld [vmem:[%s1 + $0x1b0] sm:$0xf]
    %v128 = vld [vmem:[%s1 + $0x1b4] sm:$0xf]
    %v129 = vld [vmem:[%s1 + $0x1b8] sm:$0xf]
    %v130 = vld [vmem:[%s1 + $0x1bc] sm:$0xf]
    %v131 = vld [vmem:[%s1 + $0x1c0] sm:$0xf]
    %v132 = vld [vmem:[%s1 + $0x1c4] sm:$0xf]
    %v133 = vld [vmem:[%s1 + $0x1c8] sm:$0xf]
    %v134 = vld [vmem:[%s1 + $0x1cc] sm:$0xf]
    %v135 = vld [vmem:[%s1 + $0x1d0] sm:$0xf]
    %v136 = vld [vmem:[%s1 + $0x1d4] sm:$0xf]
    %v137 = vld [vmem:[%s1 + $0x1d8] sm:$0xf]
    %v138 = vld [vmem:[%s1 + $0x1dc] sm:$0xf]
    %v139 = vld [vmem:[%s1 + $0x1e0] sm:$0xf]
    %v140 = vld [vmem:[%s1 + $0x1e4] sm:$0xf]
    %v141 = vld [vmem:[%s1 + $0x1e8] sm:$0xf]
    %v142 = vld [vmem:[%s1 + $0x1ec] sm:$0xf]
    %v143 = vld [vmem:[%s1 + $0x1f0] sm:$0xf]
    %v144 = vld [vmem:[%s1 + $0x1f4] sm:$0xf]
    %v145 = vld [vmem:[%s1 + $0x1f8] sm:$0xf]
    %v146 = vld [vmem:[%s1 + $0x1fc] sm:$0xf]
    %v147 = vld [vmem:[#allocation2] sm:$0x1]
    %149 = vset.pattern.permute.xlu0 0
    %150 = vperm.xlu0 %149, %v147
    %v151 = vpop.permute.xlu0 %150
    %v153 = vlaneseq
    %v154 = vshrl.u32 %v153, 7
    %v155 = vsub.s32 0, %v154
    %v156 = vrot.slane %v151, %v155
    %v158 = vcombine.high %v18, %v18
    %v160 = vunpack.c.l.s4 1966171168
    %v161 = vunpack.c.0.s8 %v160
    %v162 = vlaneseq
    %v163 = vshrl.u32 %v162, 7
    %v164 = vsub.s32 %v161, %v163
    %v165 = vrot.slane %v18, %v164
    %v167 = vunpack.c.l.s4 1966171168
    %v168 = vunpack.c.0.s8 %v167
    %v169 = vlaneseq
    %v170 = vshrl.u32 %v169, 7
    %v171 = vsub.s32 %v168, %v170
    %v172 = vrot.slane %v158, %v171
    %v173 = vcombine.high %v165, %v165
    %v174 = vcombine.high %v172, %v172
    %v176 = vunpack.c.l.s4 1966171168
    %v177 = vunpack.c.0.s8 %v176
    %v178 = vlaneseq
    %v179 = vshrl.u32 %v178, 7
    %v180 = vsub.s32 %v177, %v179
    %v181 = vrot.slane %v165, %v180
    %v183 = vunpack.c.l.s4 1966171168
    %v184 = vunpack.c.0.s8 %v183
    %v185 = vlaneseq
    %v186 = vshrl.u32 %v185, 7
    %v187 = vsub.s32 %v184, %v186
    %v188 = vrot.slane %v172, %v187
    %v190 = vunpack.c.l.s4 1966171168
    %v191 = vunpack.c.0.s8 %v190
    %v192 = vlaneseq
    %v193 = vshrl.u32 %v192, 7
    %v194 = vsub.s32 %v191, %v193
    %v195 = vrot.slane %v173, %v194
    %v197 = vunpack.c.l.s4 1966171168
    %v198 = vunpack.c.0.s8 %v197
    %v199 = vlaneseq
    %v200 = vshrl.u32 %v199, 7
    %v201 = vsub.s32 %v198, %v200
    %v202 = vrot.slane %v174, %v201
    %v203 = vcombine.high %v181, %v181
    %v204 = vcombine.high %v188, %v188
    %v205 = vcombine.high %v195, %v195
    %v206 = vcombine.high %v202, %v202
    %v343 = vunpack.c.l.b16 %v19
    %v344 = vunpack.c.l.b16 %v20
    %v345 = vunpack.c.l.b16 %v21
    %v346 = vunpack.c.l.b16 %v22
    %v347 = vunpack.c.l.b16 %v23
    %v348 = vunpack.c.l.b16 %v24
    %v349 = vunpack.c.l.b16 %v25
    %v350 = vunpack.c.l.b16 %v26
    %v351 = vunpack.c.l.b16 %v27
    %v352 = vunpack.c.l.b16 %v28
    %v353 = vunpack.c.l.b16 %v29
    %v354 = vunpack.c.l.b16 %v30
    %v355 = vunpack.c.l.b16 %v31
    %v356 = vunpack.c.l.b16 %v32
    %v357 = vunpack.c.l.b16 %v33
    %v358 = vunpack.c.l.b16 %v34
    %v359 = vunpack.c.l.b16 %v35
    %v360 = vunpack.c.l.b16 %v36
    %v361 = vunpack.c.l.b16 %v37
    %v362 = vunpack.c.l.b16 %v38
    %v363 = vunpack.c.l.b16 %v39
    %v364 = vunpack.c.l.b16 %v40
    %v365 = vunpack.c.l.b16 %v41
    %v366 = vunpack.c.l.b16 %v42
    %v367 = vunpack.c.l.b16 %v43
    %v368 = vunpack.c.l.b16 %v44
    %v369 = vunpack.c.l.b16 %v45
    %v370 = vunpack.c.l.b16 %v46
    %v371 = vunpack.c.l.b16 %v47
    %v372 = vunpack.c.l.b16 %v48
    %v373 = vunpack.c.l.b16 %v49
    %v374 = vunpack.c.l.b16 %v50
    %v375 = vunpack.c.l.b16 %v51
    %v376 = vunpack.c.l.b16 %v52
    %v377 = vunpack.c.l.b16 %v53
    %v378 = vunpack.c.l.b16 %v54
    %v379 = vunpack.c.l.b16 %v55
    %v380 = vunpack.c.l.b16 %v56
    %v381 = vunpack.c.l.b16 %v57
    %v382 = vunpack.c.l.b16 %v58
    %v383 = vunpack.c.l.b16 %v59
    %v384 = vunpack.c.l.b16 %v60
    %v385 = vunpack.c.l.b16 %v61
    %v386 = vunpack.c.l.b16 %v62
    %v387 = vunpack.c.l.b16 %v63
    %v388 = vunpack.c.l.b16 %v64
    %v389 = vunpack.c.l.b16 %v65
    %v390 = vunpack.c.l.b16 %v66
    %v391 = vunpack.c.l.b16 %v67
    %v392 = vunpack.c.l.b16 %v68
    %v393 = vunpack.c.l.b16 %v69
    %v394 = vunpack.c.l.b16 %v70
    %v395 = vunpack.c.l.b16 %v71
    %v396 = vunpack.c.l.b16 %v72
    %v397 = vunpack.c.l.b16 %v73
    %v398 = vunpack.c.l.b16 %v74
    %v399 = vunpack.c.l.b16 %v75
    %v400 = vunpack.c.l.b16 %v76
    %v401 = vunpack.c.l.b16 %v77
    %v402 = vunpack.c.l.b16 %v78
    %v403 = vunpack.c.l.b16 %v79
    %v404 = vunpack.c.l.b16 %v80
    %v405 = vunpack.c.l.b16 %v81
    %v406 = vunpack.c.l.b16 %v82
    %v407 = vunpack.c.l.b16 %v83
    %v408 = vunpack.c.l.b16 %v84
    %v409 = vunpack.c.l.b16 %v85
    %v410 = vunpack.c.l.b16 %v86
    %v411 = vunpack.c.l.b16 %v87
    %v412 = vunpack.c.l.b16 %v88
    %v413 = vunpack.c.l.b16 %v89
    %v414 = vunpack.c.l.b16 %v90
    %v415 = vunpack.c.l.b16 %v91
    %v416 = vunpack.c.l.b16 %v92
    %v417 = vunpack.c.l.b16 %v93
    %v418 = vunpack.c.l.b16 %v94
    %v419 = vunpack.c.l.b16 %v95
    %v420 = vunpack.c.l.b16 %v96
    %v421 = vunpack.c.l.b16 %v97
    %v422 = vunpack.c.l.b16 %v98
    %v423 = vunpack.c.l.b16 %v99
    %v424 = vunpack.c.l.b16 %v100
    %v425 = vunpack.c.l.b16 %v101
    %v426 = vunpack.c.l.b16 %v102
    %v427 = vunpack.c.l.b16 %v103
    %v428 = vunpack.c.l.b16 %v104
    %v429 = vunpack.c.l.b16 %v105
    %v430 = vunpack.c.l.b16 %v106
    %v431 = vunpack.c.l.b16 %v107
    %v432 = vunpack.c.l.b16 %v108
    %v433 = vunpack.c.l.b16 %v109
    %v434 = vunpack.c.l.b16 %v110
    %v435 = vunpack.c.l.b16 %v111
    %v436 = vunpack.c.l.b16 %v112
    %v437 = vunpack.c.l.b16 %v113
    %v438 = vunpack.c.l.b16 %v114
    %v439 = vunpack.c.l.b16 %v115
    %v440 = vunpack.c.l.b16 %v116
    %v441 = vunpack.c.l.b16 %v117
    %v442 = vunpack.c.l.b16 %v118
    %v443 = vunpack.c.l.b16 %v119
    %v444 = vunpack.c.l.b16 %v120
    %v445 = vunpack.c.l.b16 %v121
    %v446 = vunpack.c.l.b16 %v122
    %v447 = vunpack.c.l.b16 %v123
    %v448 = vunpack.c.l.b16 %v124
    %v449 = vunpack.c.l.b16 %v125
    %v450 = vunpack.c.l.b16 %v126
    %v451 = vunpack.c.l.b16 %v127
    %v452 = vunpack.c.l.b16 %v128
    %v453 = vunpack.c.l.b16 %v129
    %v454 = vunpack.c.l.b16 %v130
    %v455 = vunpack.c.l.b16 %v131
    %v456 = vunpack.c.l.b16 %v132
    %v457 = vunpack.c.l.b16 %v133
    %v458 = vunpack.c.l.b16 %v134
    %v459 = vunpack.c.l.b16 %v135
    %v460 = vunpack.c.l.b16 %v136
    %v461 = vunpack.c.l.b16 %v137
    %v462 = vunpack.c.l.b16 %v138
    %v463 = vunpack.c.l.b16 %v139
    %v464 = vunpack.c.l.b16 %v140
    %v465 = vunpack.c.l.b16 %v141
    %v466 = vunpack.c.l.b16 %v142
    %v467 = vunpack.c.l.b16 %v143
    %v468 = vunpack.c.l.b16 %v144
    %v469 = vunpack.c.l.b16 %v145
    %v470 = vunpack.c.l.b16 %v146
    %v471 = vpack.c.b16 %v344, %v343
    %v472 = vpack.c.b16 %v346, %v345
    %v473 = vpack.c.b16 %v348, %v347
    %v474 = vpack.c.b16 %v350, %v349
    %v475 = vpack.c.b16 %v352, %v351
    %v476 = vpack.c.b16 %v354, %v353
    %v477 = vpack.c.b16 %v356, %v355
    %v478 = vpack.c.b16 %v358, %v357
    %v479 = vpack.c.b16 %v360, %v359
    %v480 = vpack.c.b16 %v362, %v361
    %v481 = vpack.c.b16 %v364, %v363
    %v482 = vpack.c.b16 %v366, %v365
    %v483 = vpack.c.b16 %v368, %v367
    %v484 = vpack.c.b16 %v370, %v369
    %v485 = vpack.c.b16 %v372, %v371
    %v486 = vpack.c.b16 %v374, %v373
    %v487 = vpack.c.b16 %v376, %v375
    %v488 = vpack.c.b16 %v378, %v377
    %v489 = vpack.c.b16 %v380, %v379
    %v490 = vpack.c.b16 %v382, %v381
    %v491 = vpack.c.b16 %v384, %v383
    %v492 = vpack.c.b16 %v386, %v385
    %v493 = vpack.c.b16 %v388, %v387
    %v494 = vpack.c.b16 %v390, %v389
    %v495 = vpack.c.b16 %v392, %v391
    %v496 = vpack.c.b16 %v394, %v393
    %v497 = vpack.c.b16 %v396, %v395
    %v498 = vpack.c.b16 %v398, %v397
    %v499 = vpack.c.b16 %v400, %v399
    %v500 = vpack.c.b16 %v402, %v401
    %v501 = vpack.c.b16 %v404, %v403
    %v502 = vpack.c.b16 %v406, %v405
    %v503 = vpack.c.b16 %v408, %v407
    %v504 = vpack.c.b16 %v410, %v409
    %v505 = vpack.c.b16 %v412, %v411
    %v506 = vpack.c.b16 %v414, %v413
    %v507 = vpack.c.b16 %v416, %v415
    %v508 = vpack.c.b16 %v418, %v417
    %v509 = vpack.c.b16 %v420, %v419
    %v510 = vpack.c.b16 %v422, %v421
    %v511 = vpack.c.b16 %v424, %v423
    %v512 = vpack.c.b16 %v426, %v425
    %v513 = vpack.c.b16 %v428, %v427
    %v514 = vpack.c.b16 %v430, %v429
    %v515 = vpack.c.b16 %v432, %v431
    %v516 = vpack.c.b16 %v434, %v433
    %v517 = vpack.c.b16 %v436, %v435
    %v518 = vpack.c.b16 %v438, %v437
    %v519 = vpack.c.b16 %v440, %v439
    %v520 = vpack.c.b16 %v442, %v441
    %v521 = vpack.c.b16 %v444, %v443
    %v522 = vpack.c.b16 %v446, %v445
    %v523 = vpack.c.b16 %v448, %v447
    %v524 = vpack.c.b16 %v450, %v449
    %v525 = vpack.c.b16 %v452, %v451
    %v526 = vpack.c.b16 %v454, %v453
    %v527 = vpack.c.b16 %v456, %v455
    %v528 = vpack.c.b16 %v458, %v457
    %v529 = vpack.c.b16 %v460, %v459
    %v530 = vpack.c.b16 %v462, %v461
    %v531 = vpack.c.b16 %v464, %v463
    %v532 = vpack.c.b16 %v466, %v465
    %v533 = vpack.c.b16 %v468, %v467
    %v534 = vpack.c.b16 %v470, %v469
    %599 = vmatprep.subr.bf16.mxu0 0
    %600 = vmatpush1.bf16.msra.mxu0 %v478
    %601 = vmatprep.subr.bf16.mxu0 0
    %602 = vmatpush1.bf16.msra.mxu0 %v477
    %603 = vmatprep.subr.bf16.mxu0 0
    %604 = vmatpush1.bf16.msra.mxu0 %v476
    %605 = vmatprep.subr.bf16.mxu0 0
    %606 = vmatpush1.bf16.msra.mxu0 %v475
    %607 = vmatprep.subr.bf16.mxu0 0
    %608 = vmatpush1.bf16.msra.mxu0 %v474
    %609 = vmatprep.subr.bf16.mxu0 0
    %610 = vmatpush1.bf16.msra.mxu0 %v473
    %611 = vmatprep.subr.bf16.mxu0 0
    %612 = vmatpush1.bf16.msra.mxu0 %v472
    %613 = vmatprep.subr.bf16.mxu0 0
    %614 = vmatpush1.bf16.msra.mxu0 %v471
    %615 = vmatprep.subr.bf16.mxu0 0
    %616 = vmatpush2.bf16.msra.mxu0 %v486
    %617 = vmatprep.subr.bf16.mxu0 0
    %618 = vmatpush2.bf16.msra.mxu0 %v485
    %619 = vmatprep.subr.bf16.mxu0 0
    %620 = vmatpush2.bf16.msra.mxu0 %v484
    %621 = vmatprep.subr.bf16.mxu0 0
    %622 = vmatpush2.bf16.msra.mxu0 %v483
    %623 = vmatprep.subr.bf16.mxu0 0
    %624 = vmatpush2.bf16.msra.mxu0 %v482
    %625 = vmatprep.subr.bf16.mxu0 0
    %626 = vmatpush2.bf16.msra.mxu0 %v481
    %627 = vmatprep.subr.bf16.mxu0 0
    %628 = vmatpush2.bf16.msra.mxu0 %v480
    %629 = vmatprep.subr.bf16.mxu0 0
    %630 = vmatpush2.bf16.msra.mxu0 %v479
    %631 = vmatprep.mubr.bf16.mxu0 %v195
    %632 = vmatmul.mubr.bf16.gmra.mxu0 %v181
    %v633 = vpop.f32.mrf.mxu0
    %v634 = vadd.f32 %v156, %v633
    %v635 = vpop.f32.mrf.mxu0
    %v636 = vpop.f32.mrf.mxu0
    %v637 = vpop.f32.mrf.mxu0
    %638 = vdwg.mxu0
    %639 = vmatprep.subr.bf16.mxu0 0
    %640 = vmatpush1.bf16.msra.mxu0 %v494
    %641 = vmatprep.subr.bf16.mxu0 0
    %642 = vmatpush1.bf16.msra.mxu0 %v493
    %643 = vmatprep.subr.bf16.mxu0 0
    %644 = vmatpush1.bf16.msra.mxu0 %v492
    %645 = vmatprep.subr.bf16.mxu0 0
    %646 = vmatpush1.bf16.msra.mxu0 %v491
    %647 = vmatprep.subr.bf16.mxu0 0
    %648 = vmatpush1.bf16.msra.mxu0 %v490
    %649 = vmatprep.subr.bf16.mxu0 0
    %650 = vmatpush1.bf16.msra.mxu0 %v489
    %651 = vmatprep.subr.bf16.mxu0 0
    %652 = vmatpush1.bf16.msra.mxu0 %v488
    %653 = vmatprep.subr.bf16.mxu0 0
    %654 = vmatpush1.bf16.msra.mxu0 %v487
    %655 = vmatprep.subr.bf16.mxu0 0
    %656 = vmatpush2.bf16.msra.mxu0 %v502
    %657 = vmatprep.subr.bf16.mxu0 0
    %658 = vmatpush2.bf16.msra.mxu0 %v501
    %659 = vmatprep.subr.bf16.mxu0 0
    %660 = vmatpush2.bf16.msra.mxu0 %v500
    %661 = vmatprep.subr.bf16.mxu0 0
    %662 = vmatpush2.bf16.msra.mxu0 %v499
    %663 = vmatprep.subr.bf16.mxu0 0
    %664 = vmatpush2.bf16.msra.mxu0 %v498
    %665 = vmatprep.subr.bf16.mxu0 0
    %666 = vmatpush2.bf16.msra.mxu0 %v497
    %667 = vmatprep.subr.bf16.mxu0 0
    %668 = vmatpush2.bf16.msra.mxu0 %v496
    %669 = vmatprep.subr.bf16.mxu0 0
    %670 = vmatpush2.bf16.msra.mxu0 %v495
    %671 = vmatprep.mubr.bf16.mxu0 %v205
    %672 = vmatmul.mubr.bf16.gmra.mxu0 %v203
    %v673 = vpop.f32.mrf.mxu0
    %v674 = vadd.f32 %v634, %v673
    %v675 = vpop.f32.mrf.mxu0
    %v676 = vpop.f32.mrf.mxu0
    %v677 = vpop.f32.mrf.mxu0
    %678 = vdwg.mxu0
    %679 = vmatprep.subr.bf16.mxu0 0
    %680 = vmatpush1.bf16.msra.mxu0 %v510
    %681 = vmatprep.subr.bf16.mxu0 0
    %682 = vmatpush1.bf16.msra.mxu0 %v509
    %683 = vmatprep.subr.bf16.mxu0 0
    %684 = vmatpush1.bf16.msra.mxu0 %v508
    %685 = vmatprep.subr.bf16.mxu0 0
    %686 = vmatpush1.bf16.msra.mxu0 %v507
    %687 = vmatprep.subr.bf16.mxu0 0
    %688 = vmatpush1.bf16.msra.mxu0 %v506
    %689 = vmatprep.subr.bf16.mxu0 0
    %690 = vmatpush1.bf16.msra.mxu0 %v505
    %691 = vmatprep.subr.bf16.mxu0 0
    %692 = vmatpush1.bf16.msra.mxu0 %v504
    %693 = vmatprep.subr.bf16.mxu0 0
    %694 = vmatpush1.bf16.msra.mxu0 %v503
    %695 = vmatprep.subr.bf16.mxu0 0
    %696 = vmatpush2.bf16.msra.mxu0 %v518
    %697 = vmatprep.subr.bf16.mxu0 0
    %698 = vmatpush2.bf16.msra.mxu0 %v517
    %699 = vmatprep.subr.bf16.mxu0 0
    %700 = vmatpush2.bf16.msra.mxu0 %v516
    %701 = vmatprep.subr.bf16.mxu0 0
    %702 = vmatpush2.bf16.msra.mxu0 %v515
    %703 = vmatprep.subr.bf16.mxu0 0
    %704 = vmatpush2.bf16.msra.mxu0 %v514
    %705 = vmatprep.subr.bf16.mxu0 0
    %706 = vmatpush2.bf16.msra.mxu0 %v513
    %707 = vmatprep.subr.bf16.mxu0 0
    %708 = vmatpush2.bf16.msra.mxu0 %v512
    %709 = vmatprep.subr.bf16.mxu0 0
    %710 = vmatpush2.bf16.msra.mxu0 %v511
    %711 = vmatprep.mubr.bf16.mxu0 %v202
    %712 = vmatmul.mubr.bf16.gmra.mxu0 %v188
    %v713 = vpop.f32.mrf.mxu0
    %v714 = vadd.f32 %v674, %v713
    %v715 = vpop.f32.mrf.mxu0
    %v716 = vpop.f32.mrf.mxu0
    %v717 = vpop.f32.mrf.mxu0
    %718 = vdwg.mxu0
    %719 = vmatprep.subr.bf16.mxu0 0
    %720 = vmatpush1.bf16.msra.mxu0 %v526
    %721 = vmatprep.subr.bf16.mxu0 0
    %722 = vmatpush1.bf16.msra.mxu0 %v525
    %723 = vmatprep.subr.bf16.mxu0 0
    %724 = vmatpush1.bf16.msra.mxu0 %v524
    %725 = vmatprep.subr.bf16.mxu0 0
    %726 = vmatpush1.bf16.msra.mxu0 %v523
    %727 = vmatprep.subr.bf16.mxu0 0
    %728 = vmatpush1.bf16.msra.mxu0 %v522
    %729 = vmatprep.subr.bf16.mxu0 0
    %730 = vmatpush1.bf16.msra.mxu0 %v521
    %731 = vmatprep.subr.bf16.mxu0 0
    %732 = vmatpush1.bf16.msra.mxu0 %v520
    %733 = vmatprep.subr.bf16.mxu0 0
    %734 = vmatpush1.bf16.msra.mxu0 %v519
    %735 = vmatprep.subr.bf16.mxu0 0
    %736 = vmatpush2.bf16.msra.mxu0 %v534
    %737 = vmatprep.subr.bf16.mxu0 0
    %738 = vmatpush2.bf16.msra.mxu0 %v533
    %739 = vmatprep.subr.bf16.mxu0 0
    %740 = vmatpush2.bf16.msra.mxu0 %v532
    %741 = vmatprep.subr.bf16.mxu0 0
    %742 = vmatpush2.bf16.msra.mxu0 %v531
    %743 = vmatprep.subr.bf16.mxu0 0
    %744 = vmatpush2.bf16.msra.mxu0 %v530
    %745 = vmatprep.subr.bf16.mxu0 0
    %746 = vmatpush2.bf16.msra.mxu0 %v529
    %747 = vmatprep.subr.bf16.mxu0 0
    %748 = vmatpush2.bf16.msra.mxu0 %v528
    %749 = vmatprep.subr.bf16.mxu0 0
    %750 = vmatpush2.bf16.msra.mxu0 %v527
    %751 = vmatprep.mubr.bf16.mxu0 %v206
    %752 = vmatmul.mubr.bf16.gmra.mxu0 %v204
    %v753 = vpop.f32.mrf.mxu0
    %v754 = vadd.f32 %v714, %v753
    %v755 = vpop.f32.mrf.mxu0
    %v756 = vpop.f32.mrf.mxu0
    %v757 = vpop.f32.mrf.mxu0
    %758 = vdwg.mxu0
    %v759 = vand.u32 2147483647, %v754
    %v760 = vsub.f32 0.0, %v759
    %v761 = vmul.f32 %v760, 1.442695
    %v762 = vpow.pop %v761
    %vm763 = vcmp.ge.f32.partialorder %v754, 0.0
    %v764 = vsel %vm763, 1.0, %v762
    %v765 = vadd.f32 %v762, 1.0
    %v766 = vrcp.pop %v765
    %v767 = vmul.f32 %v764, %v766
    %vm768 = vcmask 8192
    %769 = vst.msk [vmem:[#allocation3] sm:$0x1] %vm768, %v767
    // Predicated region
    $region14: #{discriminator_forward.9} parent=1 // pred_check
      _
    $region15: #{discriminator_forward.9} parent=1 // pred_check_branch
      %771 = sbr.rel (0) target = $region17
    $region16: #{discriminator_forward.9} parent=1 // pred_region
      %s773 = ssub.s32 16, 16
      %774 = vsyncadd [#allocation4], %s773
      %s776 = sshll.u32 [#allocation3], 4
      %s777 = int_to_ptr.vmem [resolvable:$true] %s776
      %779 = dma.vmem_to_hbm [thread:$0]  %s777, 16, %s3, [#allocation4]
    $region17: #{discriminator_forward.9} parent=1 // pred_fallthru
      _
    // Predicated region
    $region18: #{discriminator_forward.9} parent=1 // pred_check
      _
    $region19: #{discriminator_forward.9} parent=1 // pred_check_branch
      %781 = sbr.rel (0) target = $region21
    $region20: #{discriminator_forward.9} parent=1 // pred_region
      %782 = dma.done [#allocation4], 16
    $region21: #{discriminator_forward.9} parent=1 // pred_fallthru
      _
    %783 = vsyncpa [#allocation4], 1

</llo_original>
